<compile_context>
chip_gen: v7x
topology: tpu7x:2x2x1
jax: 0.10.0
libtpu: 0.0.40
codegen_flags: <defaults>
</compile_context>

<pallas_src>
import jax
import jax.numpy as jnp
from jax.experimental import pallas as pl
from jax.experimental.pallas import tpu as pltpu


def _round_up(x, m):
    return ((x + m - 1) // m) * m


def _siamese_mlp_kernel(x1_ref, x2_ref, w1_ref, b1_ref, w2_ref, b2_ref,
                        w3_ref, b3_ref, alpha_ref, o1_ref, o2_ref):
    """fc1 head for one batch tile of each branch.

    Per branch: 3 matmuls (bf16 operands, f32 MXU accumulation) + 2 PReLUs.
    Weights/biases are VMEM-resident; the bf16 cast of the activations happens
    here (no wrapper-side HBM pass).
    """
    w1 = w1_ref[...]
    b1 = b1_ref[...]
    w2 = w2_ref[...]
    b2 = b2_ref[...]
    w3 = w3_ref[...]
    b3 = b3_ref[...]
    a1 = alpha_ref[0]
    a2 = alpha_ref[1]

    def head(x_f32):
        x = x_f32.astype(jnp.bfloat16)
        h1 = jnp.dot(x, w1, preferred_element_type=jnp.float32) + b1
        h1 = jnp.where(h1 > 0, h1, a1 * h1)                      # PReLU
        h2 = jnp.dot(h1.astype(jnp.bfloat16), w2,
                     preferred_element_type=jnp.float32) + b2
        h2 = jnp.where(h2 > 0, h2, a2 * h2)                      # PReLU
        out = jnp.dot(h2.astype(jnp.bfloat16), w3,
                      preferred_element_type=jnp.float32) + b3
        return out.astype(o1_ref.dtype)

    o1_ref[...] = head(x1_ref[...])
    o2_ref[...] = head(x2_ref[...])


def _choose_tile(total):
    """Batch tile: multiple of 16, <=1024 rows, pad waste <=~12.5%, and >=2
    grid steps whenever that costs no extra padding (megacore on v7x)."""
    total = max(int(total), 1)
    padded16 = _round_up(total, 16)
    if padded16 <= 1024:
        if padded16 >= 32 and padded16 % 32 == 0:
            return padded16 // 2, padded16        # 2 steps for free
        return padded16, padded16                 # single full-batch tile
    for t in (1024, 512, 256, 128, 64, 32, 16):
        padded = _round_up(total, t)
        if (padded - total) * 8 <= total:          # pad waste <= 12.5%
            return t, padded
    return 16, padded16


def siamese_forward(input1, input2, kparams):
    """Matches SiameseNetwork.forward: returns (output1, output2), each (B, 2) f32."""
    w1, b1, w2, b2, w3p, b3p, alphas = kparams
    assert input1.shape == input2.shape
    total, in_f = input1.shape

    tile_b, padded = _choose_tile(total)
    if padded != total:
        pad = ((0, padded - total), (0, 0))
        input1 = jnp.pad(input1, pad)
        input2 = jnp.pad(input2, pad)

    grid = (padded // tile_b,)

    act_spec = pl.BlockSpec((tile_b, in_f), lambda i: (i, 0))
    out_spec = pl.BlockSpec((tile_b, 128), lambda i: (i, 0))
    resident = pl.Buffered(1)   # constant block index -> no need to double-buffer

    out1, out2 = pl.pallas_call(
        _siamese_mlp_kernel,
        out_shape=(jax.ShapeDtypeStruct((padded, 128), jnp.bfloat16),
                   jax.ShapeDtypeStruct((padded, 128), jnp.bfloat16)),
        grid=grid,
        in_specs=[
            act_spec,                                                    # input1 tile
            act_spec,                                                    # input2 tile
            pl.BlockSpec(w1.shape, lambda i: (0, 0), pipeline_mode=resident),
            pl.BlockSpec(b1.shape, lambda i: (0, 0), pipeline_mode=resident),
            pl.BlockSpec(w2.shape, lambda i: (0, 0), pipeline_mode=resident),
            pl.BlockSpec(b2.shape, lambda i: (0, 0), pipeline_mode=resident),
            pl.BlockSpec(w3p.shape, lambda i: (0, 0), pipeline_mode=resident),
            pl.BlockSpec(b3p.shape, lambda i: (0, 0), pipeline_mode=resident),
            pl.BlockSpec(memory_space=pltpu.MemorySpace.SMEM),           # PReLU slopes
        ],
        out_specs=(out_spec, out_spec),
        compiler_params=pltpu.CompilerParams(
            dimension_semantics=("parallel",),
            vmem_limit_bytes=48 * 1024 * 1024),
    )(input1, input2, w1, b1, w2, b2, w3p, b3p, alphas)

    return (out1[:total, :2].astype(jnp.float32),
            out2[:total, :2].astype(jnp.float32))


def init_params():
    """Deterministic init matching _initialize_weights():
       Linear.weight ~ N(0, 0.01), Linear.bias = 0, PReLU slope = 0.25.
    Returns (kernel_params, reference_params_f32)."""
    key = jax.random.PRNGKey(42)
    k1, k2, k3 = jax.random.split(key, 3)
    # Stored directly in (in, out) layout (i.e. W^T of torch's (out, in)).
    w1 = jax.random.normal(k1, (1024, 256), jnp.float32) * 0.01
    b1 = jnp.zeros((1, 256), jnp.float32)
    w2 = jax.random.normal(k2, (256, 256), jnp.float32) * 0.01
    b2 = jnp.zeros((1, 256), jnp.float32)
    w3 = jax.random.normal(k3, (256, 2), jnp.float32) * 0.01
    b3 = jnp.zeros((1, 2), jnp.float32)
    alphas = jnp.full((2,), 0.25, jnp.float32)        # PReLU slopes, layers 1 & 2

    # Kernel-side params: bf16 weights, final layer zero-padded to 128 lanes
    # so the last matmul and the output store are lane-dense.
    w3p = jnp.zeros((256, 128), jnp.float32).at[:, :2].set(w3)
    b3p = jnp.zeros((1, 128), jnp.float32).at[:, :2].set(b3)
    kparams = (w1.astype(jnp.bfloat16), b1,
               w2.astype(jnp.bfloat16), b2,
               w3p.astype(jnp.bfloat16), b3p,
               alphas)
    ref_params = (w1, b1, w2, b2, w3, b3, alphas)
    return kparams, ref_params


def _reference(x, ref_params):
    """Plain-JAX f32 reference for a sanity check."""
    w1, b1, w2, b2, w3, b3, alphas = ref_params
    h1 = x @ w1 + b1
    h1 = jnp.where(h1 > 0, h1, alphas[0] * h1)
    h2 = h1 @ w2 + b2
    h2 = jnp.where(h2 > 0, h2, alphas[1] * h2)
    return h2 @ w3 + b3


if __name__ == "__main__":
    kparams, ref_params = init_params()

    key = jax.random.PRNGKey(0)
    kx1, kx2 = jax.random.split(key)
    B = 8
    input1 = jax.random.normal(kx1, (B, 1024), jnp.float32)
    input2 = jax.random.normal(kx2, (B, 1024), jnp.float32)

    fwd = jax.jit(siamese_forward)
    out1, out2 = fwd(input1, input2, kparams)
    out1 = jax.block_until_ready(out1)
    out2 = jax.block_until_ready(out2)

    # Correctness check against pure-JAX f32 reference (loose tolerance: the
    # kernel uses bf16 matmul operands / bf16 output store with f32 accumulation).
    ref1 = _reference(input1, ref_params)
    ref2 = _reference(input2, ref_params)
    assert out1.shape == (B, 2) and out2.shape == (B, 2)
    assert jnp.allclose(out1, ref1, atol=2e-3, rtol=2e-2)
    assert jnp.allclose(out2, ref2, atol=2e-3, rtol=2e-2)

    # TODO(synk): cnn1 (Conv2d/PReLU/MaxPool stack) is defined in __init__ but
    # unused by forward(), so it is intentionally not implemented here.
    print("KERNEL_OK")
</pallas_src>

<mosaic_0001>
module attributes {stable_mosaic.version = 11 : i64} {
  func.func @_siamese_mlp_kernel(%arg0: i32, %arg1: memref<16x1024xf32, #tpu.memory_space<vmem>>, %arg2: memref<16x1024xf32, #tpu.memory_space<vmem>>, %arg3: memref<1024x256xbf16, #tpu.memory_space<vmem>>, %arg4: memref<1x256xf32, #tpu.memory_space<vmem>>, %arg5: memref<256x256xbf16, #tpu.memory_space<vmem>>, %arg6: memref<1x256xf32, #tpu.memory_space<vmem>>, %arg7: memref<256x128xbf16, #tpu.memory_space<vmem>>, %arg8: memref<1x128xf32, #tpu.memory_space<vmem>>, %arg9: memref<2xf32, #tpu.memory_space<smem>>, %arg10: memref<16x128xbf16, #tpu.memory_space<vmem>>, %arg11: memref<16x128xbf16, #tpu.memory_space<vmem>>) attributes {dimension_semantics = [#tpu.dimension_semantics<parallel>], iteration_bounds = array<i64: 1>, scalar_prefetch = 0 : i64, scratch_operands = 0 : i64, tpu.core_type = #tpu.core_type<tc>, window_params = [{transform_indices = @transform_0, window_bounds = array<i64: 16, 1024>}, {transform_indices = @transform_1, window_bounds = array<i64: 16, 1024>}, {pipeline_mode = #tpu.pipeline_mode<synchronous>, transform_indices = @transform_2, window_bounds = array<i64: 1024, 256>}, {pipeline_mode = #tpu.pipeline_mode<synchronous>, transform_indices = @transform_3, window_bounds = array<i64: 1, 256>}, {pipeline_mode = #tpu.pipeline_mode<synchronous>, transform_indices = @transform_4, window_bounds = array<i64: 256, 256>}, {pipeline_mode = #tpu.pipeline_mode<synchronous>, transform_indices = @transform_5, window_bounds = array<i64: 1, 256>}, {pipeline_mode = #tpu.pipeline_mode<synchronous>, transform_indices = @transform_6, window_bounds = array<i64: 256, 128>}, {pipeline_mode = #tpu.pipeline_mode<synchronous>, transform_indices = @transform_7, window_bounds = array<i64: 1, 128>}, {transform_indices = @transform_8, window_bounds = array<i64: 2>}, {transform_indices = @transform_9, window_bounds = array<i64: 16, 128>}, {transform_indices = @transform_10, window_bounds = array<i64: 16, 128>}]} {
    %c0 = arith.constant 0 : index
    %c0_0 = arith.constant 0 : index
    %0 = vector.load %arg3[%c0, %c0_0] : memref<1024x256xbf16, #tpu.memory_space<vmem>>, vector<1024x256xbf16>
    %c0_1 = arith.constant 0 : index
    %c0_2 = arith.constant 0 : index
    %1 = vector.load %arg4[%c0_1, %c0_2] : memref<1x256xf32, #tpu.memory_space<vmem>>, vector<1x256xf32>
    %c0_3 = arith.constant 0 : index
    %c0_4 = arith.constant 0 : index
    %2 = vector.load %arg5[%c0_3, %c0_4] : memref<256x256xbf16, #tpu.memory_space<vmem>>, vector<256x256xbf16>
    %c0_5 = arith.constant 0 : index
    %c0_6 = arith.constant 0 : index
    %3 = vector.load %arg6[%c0_5, %c0_6] : memref<1x256xf32, #tpu.memory_space<vmem>>, vector<1x256xf32>
    %c0_7 = arith.constant 0 : index
    %c0_8 = arith.constant 0 : index
    %4 = vector.load %arg7[%c0_7, %c0_8] : memref<256x128xbf16, #tpu.memory_space<vmem>>, vector<256x128xbf16>
    %c0_9 = arith.constant 0 : index
    %c0_10 = arith.constant 0 : index
    %5 = vector.load %arg8[%c0_9, %c0_10] : memref<1x128xf32, #tpu.memory_space<vmem>>, vector<1x128xf32>
    %c0_11 = arith.constant 0 : index
    %6 = memref.load %arg9[%c0_11] : memref<2xf32, #tpu.memory_space<smem>>
    %c1 = arith.constant 1 : index
    %7 = memref.load %arg9[%c1] : memref<2xf32, #tpu.memory_space<smem>>
    %c0_12 = arith.constant 0 : index
    %c0_13 = arith.constant 0 : index
    %8 = vector.load %arg1[%c0_12, %c0_13] : memref<16x1024xf32, #tpu.memory_space<vmem>>, vector<16x1024xf32>
    %9 = arith.truncf %8 : vector<16x1024xf32> to vector<16x1024xbf16>
    %cst = arith.constant dense<0.000000e+00> : vector<16x256xf32>
    %10 = tpu.matmul %9, %0, %cst {dimension_numbers = #tpu.dot_dimension_numbers<[1], [0], [0], [1], [0, 0, 1, 1], [], []>} : vector<16x1024xbf16>, vector<1024x256xbf16>, vector<16x256xf32> -> vector<16x256xf32>
    %11 = vector.broadcast %1 : vector<1x256xf32> to vector<16x256xf32>
    %12 = arith.addf %10, %11 : vector<16x256xf32>
    %cst_14 = arith.constant 0.000000e+00 : f32
    %13 = vector.broadcast %cst_14 : f32 to vector<16x256xf32>
    %14 = arith.cmpf ogt, %12, %13 : vector<16x256xf32>
    %15 = vector.broadcast %6 : f32 to vector<16x256xf32>
    %16 = arith.mulf %15, %12 : vector<16x256xf32>
    %17 = arith.select %14, %12, %16 : vector<16x256xi1>, vector<16x256xf32>
    %18 = arith.truncf %17 : vector<16x256xf32> to vector<16x256xbf16>
    %cst_15 = arith.constant dense<0.000000e+00> : vector<16x256xf32>
    %19 = tpu.matmul %18, %2, %cst_15 {dimension_numbers = #tpu.dot_dimension_numbers<[1], [0], [0], [1], [0, 0, 1, 1], [], []>} : vector<16x256xbf16>, vector<256x256xbf16>, vector<16x256xf32> -> vector<16x256xf32>
    %20 = vector.broadcast %3 : vector<1x256xf32> to vector<16x256xf32>
    %21 = arith.addf %19, %20 : vector<16x256xf32>
    %cst_16 = arith.constant 0.000000e+00 : f32
    %22 = vector.broadcast %cst_16 : f32 to vector<16x256xf32>
    %23 = arith.cmpf ogt, %21, %22 : vector<16x256xf32>
    %24 = vector.broadcast %7 : f32 to vector<16x256xf32>
    %25 = arith.mulf %24, %21 : vector<16x256xf32>
    %26 = arith.select %23, %21, %25 : vector<16x256xi1>, vector<16x256xf32>
    %27 = arith.truncf %26 : vector<16x256xf32> to vector<16x256xbf16>
    %cst_17 = arith.constant dense<0.000000e+00> : vector<16x128xf32>
    %28 = tpu.matmul %27, %4, %cst_17 {dimension_numbers = #tpu.dot_dimension_numbers<[1], [0], [0], [1], [0, 0, 1, 1], [], []>} : vector<16x256xbf16>, vector<256x128xbf16>, vector<16x128xf32> -> vector<16x128xf32>
    %29 = vector.broadcast %5 : vector<1x128xf32> to vector<16x128xf32>
    %30 = arith.addf %28, %29 : vector<16x128xf32>
    %31 = arith.truncf %30 : vector<16x128xf32> to vector<16x128xbf16>
    %c0_18 = arith.constant 0 : index
    %c0_19 = arith.constant 0 : index
    %32 = vector.load %arg10[%c0_18, %c0_19] : memref<16x128xbf16, #tpu.memory_space<vmem>>, vector<16x128xbf16>
    tpu.vector_store %arg10[%c0_18, %c0_19], %31 {strides = array<i32>} : memref<16x128xbf16, #tpu.memory_space<vmem>>, vector<16x128xbf16>,
    %c0_20 = arith.constant 0 : index
    %c0_21 = arith.constant 0 : index
    %33 = vector.load %arg2[%c0_20, %c0_21] : memref<16x1024xf32, #tpu.memory_space<vmem>>, vector<16x1024xf32>
    %34 = arith.truncf %33 : vector<16x1024xf32> to vector<16x1024xbf16>
    %cst_22 = arith.constant dense<0.000000e+00> : vector<16x256xf32>
    %35 = tpu.matmul %34, %0, %cst_22 {dimension_numbers = #tpu.dot_dimension_numbers<[1], [0], [0], [1], [0, 0, 1, 1], [], []>} : vector<16x1024xbf16>, vector<1024x256xbf16>, vector<16x256xf32> -> vector<16x256xf32>
    %36 = vector.broadcast %1 : vector<1x256xf32> to vector<16x256xf32>
    %37 = arith.addf %35, %36 : vector<16x256xf32>
    %cst_23 = arith.constant 0.000000e+00 : f32
    %38 = vector.broadcast %cst_23 : f32 to vector<16x256xf32>
    %39 = arith.cmpf ogt, %37, %38 : vector<16x256xf32>
    %40 = vector.broadcast %6 : f32 to vector<16x256xf32>
    %41 = arith.mulf %40, %37 : vector<16x256xf32>
    %42 = arith.select %39, %37, %41 : vector<16x256xi1>, vector<16x256xf32>
    %43 = arith.truncf %42 : vector<16x256xf32> to vector<16x256xbf16>
    %cst_24 = arith.constant dense<0.000000e+00> : vector<16x256xf32>
    %44 = tpu.matmul %43, %2, %cst_24 {dimension_numbers = #tpu.dot_dimension_numbers<[1], [0], [0], [1], [0, 0, 1, 1], [], []>} : vector<16x256xbf16>, vector<256x256xbf16>, vector<16x256xf32> -> vector<16x256xf32>
    %45 = vector.broadcast %3 : vector<1x256xf32> to vector<16x256xf32>
    %46 = arith.addf %44, %45 : vector<16x256xf32>
    %cst_25 = arith.constant 0.000000e+00 : f32
    %47 = vector.broadcast %cst_25 : f32 to vector<16x256xf32>
    %48 = arith.cmpf ogt, %46, %47 : vector<16x256xf32>
    %49 = vector.broadcast %7 : f32 to vector<16x256xf32>
    %50 = arith.mulf %49, %46 : vector<16x256xf32>
    %51 = arith.select %48, %46, %50 : vector<16x256xi1>, vector<16x256xf32>
    %52 = arith.truncf %51 : vector<16x256xf32> to vector<16x256xbf16>
    %cst_26 = arith.constant dense<0.000000e+00> : vector<16x128xf32>
    %53 = tpu.matmul %52, %4, %cst_26 {dimension_numbers = #tpu.dot_dimension_numbers<[1], [0], [0], [1], [0, 0, 1, 1], [], []>} : vector<16x256xbf16>, vector<256x128xbf16>, vector<16x128xf32> -> vector<16x128xf32>
    %54 = vector.broadcast %5 : vector<1x128xf32> to vector<16x128xf32>
    %55 = arith.addf %53, %54 : vector<16x128xf32>
    %56 = arith.truncf %55 : vector<16x128xf32> to vector<16x128xbf16>
    %c0_27 = arith.constant 0 : index
    %c0_28 = arith.constant 0 : index
    %57 = vector.load %arg11[%c0_27, %c0_28] : memref<16x128xbf16, #tpu.memory_space<vmem>>, vector<16x128xbf16>
    tpu.vector_store %arg11[%c0_27, %c0_28], %56 {strides = array<i32>} : memref<16x128xbf16, #tpu.memory_space<vmem>>, vector<16x128xbf16>,
    return
  }
  func.func @transform_0(%arg0: i32) -> (i32, i32) {
    %c0_i32 = arith.constant 0 : i32
    %c0_i32_0 = arith.constant 0 : i32
    return %arg0, %c0_i32 : i32, i32
  }
  func.func @transform_1(%arg0: i32) -> (i32, i32) {
    %c0_i32 = arith.constant 0 : i32
    %c0_i32_0 = arith.constant 0 : i32
    return %arg0, %c0_i32 : i32, i32
  }
  func.func @transform_2(%arg0: i32) -> (i32, i32) {
    %c0_i32 = arith.constant 0 : i32
    %c0_i32_0 = arith.constant 0 : i32
    %c0_i32_1 = arith.constant 0 : i32
    return %c0_i32, %c0_i32_0 : i32, i32
  }
  func.func @transform_3(%arg0: i32) -> (i32, i32) {
    %c0_i32 = arith.constant 0 : i32
    %c0_i32_0 = arith.constant 0 : i32
    %c0_i32_1 = arith.constant 0 : i32
    return %c0_i32, %c0_i32_0 : i32, i32
  }
  func.func @transform_4(%arg0: i32) -> (i32, i32) {
    %c0_i32 = arith.constant 0 : i32
    %c0_i32_0 = arith.constant 0 : i32
    %c0_i32_1 = arith.constant 0 : i32
    return %c0_i32, %c0_i32_0 : i32, i32
  }
  func.func @transform_5(%arg0: i32) -> (i32, i32) {
    %c0_i32 = arith.constant 0 : i32
    %c0_i32_0 = arith.constant 0 : i32
    %c0_i32_1 = arith.constant 0 : i32
    return %c0_i32, %c0_i32_0 : i32, i32
  }
  func.func @transform_6(%arg0: i32) -> (i32, i32) {
    %c0_i32 = arith.constant 0 : i32
    %c0_i32_0 = arith.constant 0 : i32
    %c0_i32_1 = arith.constant 0 : i32
    return %c0_i32, %c0_i32_0 : i32, i32
  }
  func.func @transform_7(%arg0: i32) -> (i32, i32) {
    %c0_i32 = arith.constant 0 : i32
    %c0_i32_0 = arith.constant 0 : i32
    %c0_i32_1 = arith.constant 0 : i32
    return %c0_i32, %c0_i32_0 : i32, i32
  }
  func.func @transform_8(%arg0: i32) -> i32 {
    %c0_i32 = arith.constant 0 : i32
    %c0_i32_0 = arith.constant 0 : i32
    return %c0_i32 : i32
  }
  func.func @transform_9(%arg0: i32) -> (i32, i32) {
    %c0_i32 = arith.constant 0 : i32
    %c0_i32_0 = arith.constant 0 : i32
    return %arg0, %c0_i32 : i32, i32
  }
  func.func @transform_10(%arg0: i32) -> (i32, i32) {
    %c0_i32 = arith.constant 0 : i32
    %c0_i32_0 = arith.constant 0 : i32
    return %arg0, %c0_i32 : i32, i32
  }
}

</mosaic_0001>

<llo_original>
// kernel: siamese_forward.1
$region0: #{siamese_forward.1}
  #allocation0 [shape = 'u32[]', space=smem, size = 0x4, offset = 0x4, fixed_abs, tag = 'smem constant byte address 0x4 - core index']
  #allocation1 [shape = 'u32[144,128]{1,0:T(1,128)}', space=vmem, size = 0x12000, scoped, tag = 'internal scratch']
  %s0 = inlined_call_operand.vmem [shape: f32[16,1024], index: 0, kind: input, shape index: {}]
  %s1 = inlined_call_operand.vmem [shape: f32[16,1024], index: 1, kind: input, shape index: {}]
  %s2 = inlined_call_operand.hbm [shape: bf16[1024,256], index: 2, kind: input, shape index: {}]
  %s3 = inlined_call_operand.vmem [shape: f32[1,256], index: 3, kind: input, shape index: {}]
  %s4 = inlined_call_operand.vmem [shape: bf16[256,256], index: 4, kind: input, shape index: {}]
  %s5 = inlined_call_operand.vmem [shape: f32[1,256], index: 5, kind: input, shape index: {}]
  %s6 = inlined_call_operand.vmem [shape: bf16[256,128], index: 6, kind: input, shape index: {}]
  %s7 = inlined_call_operand.vmem [shape: f32[1,128], index: 7, kind: input, shape index: {}]
  %s8 = inlined_call_operand.vmem [shape: f32[2], index: 8, kind: input, shape index: {}]
  %s9 = inlined_call_operand.vmem [shape: bf16[16,128], index: 9, kind: output, shape index: {0}]
  %s10 = inlined_call_operand.vmem [shape: bf16[16,128], index: 10, kind: output, shape index: {1}]
  %11 = xla_tuple %s9, %s10
  %s12 = sld [smem:[#allocation0]]
  $region62: #{siamese_forward.1} parent=0
    _
  %s14 = ssub.s32 1, %s12
  %s15 = scalar_select 0, %s14, %s12
  $region1: #{siamese_forward.1} parent=0
    #allocation2 [shape = 'u8[524288]{0}', space=vmem, size = 0x80000, scoped, tag = 'input window, operand 2, single buffered']
    #allocation3 [shape = 's32[1]{0}', space=sflag, size = 0x4, scoped, tag = 'scoped memory for siamese_forward.1']
    #allocation4 [shape = 's32[1]{0}', space=sflag, size = 0x4, scoped, tag = 'scoped memory for siamese_forward.1']
    #allocation5 [shape = 'u8[512]{0}', space=smem, size = 0x200, scoped, tag = 'input window, operand 8, single buffered']
    %16 = vsyncpa [#allocation3], 0
    %17 = vsyncpa [#allocation4], 0
    // Predicated region
    $region2: #{siamese_forward.1} parent=1 // pred_check
      _
    $region3: #{siamese_forward.1} parent=1 // pred_check_branch
      %19 = sbr.rel (0) target = $region5
    $region4: #{siamese_forward.1} parent=1 // pred_region
      _
    $region5: #{siamese_forward.1} parent=1 // pred_fallthru
      _
    // Predicated region
    $region6: #{siamese_forward.1} parent=1 // pred_check
      _
    $region7: #{siamese_forward.1} parent=1 // pred_check_branch
      %21 = sbr.rel (0) target = $region9
    $region8: #{siamese_forward.1} parent=1 // pred_region
      _
    $region9: #{siamese_forward.1} parent=1 // pred_fallthru
      _
    // Predicated region
    $region10: #{siamese_forward.1} parent=1 // pred_check
      _
    $region11: #{siamese_forward.1} parent=1 // pred_check_branch
      %23 = sbr.rel (0) target = $region13
    $region12: #{siamese_forward.1} parent=1 // pred_region
      %s25 = ssub.s32 16384, 16384
      %26 = vsyncadd [#allocation3], %s25
      %s27 = sshll.u32 [#allocation2], 4
      %s28 = int_to_ptr.vmem [resolvable:$true] %s27
      %33 = dma.hbm_to_vmem [thread:$0]  %s2, 16384, %s28, [#allocation3], 128, 128, 8
    $region13: #{siamese_forward.1} parent=1 // pred_fallthru
      _
    // Predicated region
    $region14: #{siamese_forward.1} parent=1 // pred_check
      _
    $region15: #{siamese_forward.1} parent=1 // pred_check_branch
      %35 = sbr.rel (0) target = $region17
    $region16: #{siamese_forward.1} parent=1 // pred_region
      _
    $region17: #{siamese_forward.1} parent=1 // pred_fallthru
      _
    // Predicated region
    $region18: #{siamese_forward.1} parent=1 // pred_check
      _
    $region19: #{siamese_forward.1} parent=1 // pred_check_branch
      %37 = sbr.rel (0) target = $region21
    $region20: #{siamese_forward.1} parent=1 // pred_region
      _
    $region21: #{siamese_forward.1} parent=1 // pred_fallthru
      _
    // Predicated region
    $region22: #{siamese_forward.1} parent=1 // pred_check
      _
    $region23: #{siamese_forward.1} parent=1 // pred_check_branch
      %39 = sbr.rel (0) target = $region25
    $region24: #{siamese_forward.1} parent=1 // pred_region
      _
    $region25: #{siamese_forward.1} parent=1 // pred_fallthru
      _
    // Predicated region
    $region26: #{siamese_forward.1} parent=1 // pred_check
      _
    $region27: #{siamese_forward.1} parent=1 // pred_check_branch
      %41 = sbr.rel (0) target = $region29
    $region28: #{siamese_forward.1} parent=1 // pred_region
      _
    $region29: #{siamese_forward.1} parent=1 // pred_fallthru
      _
    // Predicated region
    $region30: #{siamese_forward.1} parent=1 // pred_check
      _
    $region31: #{siamese_forward.1} parent=1 // pred_check_branch
      %43 = sbr.rel (0) target = $region33
    $region32: #{siamese_forward.1} parent=1 // pred_region
      _
    $region33: #{siamese_forward.1} parent=1 // pred_fallthru
      _
    // Predicated region
    $region34: #{siamese_forward.1} parent=1 // pred_check
      _
    $region35: #{siamese_forward.1} parent=1 // pred_check_branch
      %45 = sbr.rel (0) target = $region37
    $region36: #{siamese_forward.1} parent=1 // pred_region
      %s47 = ssub.s32 16, 16
      %48 = vsyncadd [#allocation4], %s47
      %s50 = sshll.u32 %s8, 4
      %s51 = int_to_ptr.vmem [resolvable:$true] %s50
      %53 = dma.vmem_to_smem %s51, 16, [#allocation5], [#allocation4]
    $region37: #{siamese_forward.1} parent=1 // pred_fallthru
      _
    // Predicated region
    $region38: #{siamese_forward.1} parent=1 // pred_check
      _
    $region39: #{siamese_forward.1} parent=1 // pred_check_branch
      %55 = sbr.rel (0) target = $region41
    $region40: #{siamese_forward.1} parent=1 // pred_region
      %56 = dma.done [#allocation3], 16384
    $region41: #{siamese_forward.1} parent=1 // pred_fallthru
      _
    // Predicated region
    $region42: #{siamese_forward.1} parent=1 // pred_check
      _
    $region43: #{siamese_forward.1} parent=1 // pred_check_branch
      %58 = sbr.rel (0) target = $region45
    $region44: #{siamese_forward.1} parent=1 // pred_region
      %59 = dma.done [#allocation4], 16
    $region45: #{siamese_forward.1} parent=1 // pred_fallthru
      _
    %60 = sfence
    %v62 = vld [vmem:[#allocation2] sm:$0xff]
    %v63 = vld [vmem:[#allocation2 + $0x8] sm:$0xff]
    %v64 = vld [vmem:[#allocation2 + $0x10] sm:$0xff]
    %v65 = vld [vmem:[#allocation2 + $0x18] sm:$0xff]
    %v66 = vld [vmem:[#allocation2 + $0x20] sm:$0xff]
    %v67 = vld [vmem:[#allocation2 + $0x28] sm:$0xff]
    %v68 = vld [vmem:[#allocation2 + $0x30] sm:$0xff]
    %v69 = vld [vmem:[#allocation2 + $0x38] sm:$0xff]
    %v70 = vld [vmem:[#allocation2 + $0x40] sm:$0xff]
    %v71 = vld [vmem:[#allocation2 + $0x48] sm:$0xff]
    %v72 = vld [vmem:[#allocation2 + $0x50] sm:$0xff]
    %v73 = vld [vmem:[#allocation2 + $0x58] sm:$0xff]
    %v74 = vld [vmem:[#allocation2 + $0x60] sm:$0xff]
    %v75 = vld [vmem:[#allocation2 + $0x68] sm:$0xff]
    %v76 = vld [vmem:[#allocation2 + $0x70] sm:$0xff]
    %v77 = vld [vmem:[#allocation2 + $0x78] sm:$0xff]
    %v78 = vld [vmem:[#allocation2 + $0x80] sm:$0xff]
    %v79 = vld [vmem:[#allocation2 + $0x88] sm:$0xff]
    %v80 = vld [vmem:[#allocation2 + $0x90] sm:$0xff]
    %v81 = vld [vmem:[#allocation2 + $0x98] sm:$0xff]
    %v82 = vld [vmem:[#allocation2 + $0xa0] sm:$0xff]
    %v83 = vld [vmem:[#allocation2 + $0xa8] sm:$0xff]
    %v84 = vld [vmem:[#allocation2 + $0xb0] sm:$0xff]
    %v85 = vld [vmem:[#allocation2 + $0xb8] sm:$0xff]
    %v86 = vld [vmem:[#allocation2 + $0xc0] sm:$0xff]
    %v87 = vld [vmem:[#allocation2 + $0xc8] sm:$0xff]
    %v88 = vld [vmem:[#allocation2 + $0xd0] sm:$0xff]
    %v89 = vld [vmem:[#allocation2 + $0xd8] sm:$0xff]
    %v90 = vld [vmem:[#allocation2 + $0xe0] sm:$0xff]
    %v91 = vld [vmem:[#allocation2 + $0xe8] sm:$0xff]
    %v92 = vld [vmem:[#allocation2 + $0xf0] sm:$0xff]
    %v93 = vld [vmem:[#allocation2 + $0xf8] sm:$0xff]
    %v94 = vld [vmem:[#allocation2 + $0x100] sm:$0xff]
    %v95 = vld [vmem:[#allocation2 + $0x108] sm:$0xff]
    %v96 = vld [vmem:[#allocation2 + $0x110] sm:$0xff]
    %v97 = vld [vmem:[#allocation2 + $0x118] sm:$0xff]
    %v98 = vld [vmem:[#allocation2 + $0x120] sm:$0xff]
    %v99 = vld [vmem:[#allocation2 + $0x128] sm:$0xff]
    %v100 = vld [vmem:[#allocation2 + $0x130] sm:$0xff]
    %v101 = vld [vmem:[#allocation2 + $0x138] sm:$0xff]
    %v102 = vld [vmem:[#allocation2 + $0x140] sm:$0xff]
    %v103 = vld [vmem:[#allocation2 + $0x148] sm:$0xff]
    %v104 = vld [vmem:[#allocation2 + $0x150] sm:$0xff]
    %v105 = vld [vmem:[#allocation2 + $0x158] sm:$0xff]
    %v106 = vld [vmem:[#allocation2 + $0x160] sm:$0xff]
    %v107 = vld [vmem:[#allocation2 + $0x168] sm:$0xff]
    %v108 = vld [vmem:[#allocation2 + $0x170] sm:$0xff]
    %v109 = vld [vmem:[#allocation2 + $0x178] sm:$0xff]
    %v110 = vld [vmem:[#allocation2 + $0x180] sm:$0xff]
    %v111 = vld [vmem:[#allocation2 + $0x188] sm:$0xff]
    %v112 = vld [vmem:[#allocation2 + $0x190] sm:$0xff]
    %v113 = vld [vmem:[#allocation2 + $0x198] sm:$0xff]
    %v114 = vld [vmem:[#allocation2 + $0x1a0] sm:$0xff]
    %v115 = vld [vmem:[#allocation2 + $0x1a8] sm:$0xff]
    %v116 = vld [vmem:[#allocation2 + $0x1b0] sm:$0xff]
    %v117 = vld [vmem:[#allocation2 + $0x1b8] sm:$0xff]
    %v118 = vld [vmem:[#allocation2 + $0x1c0] sm:$0xff]
    %v119 = vld [vmem:[#allocation2 + $0x1c8] sm:$0xff]
    %v120 = vld [vmem:[#allocation2 + $0x1d0] sm:$0xff]
    %v121 = vld [vmem:[#allocation2 + $0x1d8] sm:$0xff]
    %v122 = vld [vmem:[#allocation2 + $0x1e0] sm:$0xff]
    %v123 = vld [vmem:[#allocation2 + $0x1e8] sm:$0xff]
    %v124 = vld [vmem:[#allocation2 + $0x1f0] sm:$0xff]
    %v125 = vld [vmem:[#allocation2 + $0x1f8] sm:$0xff]
    %v126 = vld [vmem:[#allocation2 + $0x200] sm:$0xff]
    %v127 = vld [vmem:[#allocation2 + $0x208] sm:$0xff]
    %v128 = vld [vmem:[#allocation2 + $0x210] sm:$0xff]
    %v129 = vld [vmem:[#allocation2 + $0x218] sm:$0xff]
    %v130 = vld [vmem:[#allocation2 + $0x220] sm:$0xff]
    %v131 = vld [vmem:[#allocation2 + $0x228] sm:$0xff]
    %v132 = vld [vmem:[#allocation2 + $0x230] sm:$0xff]
    %v133 = vld [vmem:[#allocation2 + $0x238] sm:$0xff]
    %v134 = vld [vmem:[#allocation2 + $0x240] sm:$0xff]
    %v135 = vld [vmem:[#allocation2 + $0x248] sm:$0xff]
    %v136 = vld [vmem:[#allocation2 + $0x250] sm:$0xff]
    %v137 = vld [vmem:[#allocation2 + $0x258] sm:$0xff]
    %v138 = vld [vmem:[#allocation2 + $0x260] sm:$0xff]
    %v139 = vld [vmem:[#allocation2 + $0x268] sm:$0xff]
    %v140 = vld [vmem:[#allocation2 + $0x270] sm:$0xff]
    %v141 = vld [vmem:[#allocation2 + $0x278] sm:$0xff]
    %v142 = vld [vmem:[#allocation2 + $0x280] sm:$0xff]
    %v143 = vld [vmem:[#allocation2 + $0x288] sm:$0xff]
    %v144 = vld [vmem:[#allocation2 + $0x290] sm:$0xff]
    %v145 = vld [vmem:[#allocation2 + $0x298] sm:$0xff]
    %v146 = vld [vmem:[#allocation2 + $0x2a0] sm:$0xff]
    %v147 = vld [vmem:[#allocation2 + $0x2a8] sm:$0xff]
    %v148 = vld [vmem:[#allocation2 + $0x2b0] sm:$0xff]
    %v149 = vld [vmem:[#allocation2 + $0x2b8] sm:$0xff]
    %v150 = vld [vmem:[#allocation2 + $0x2c0] sm:$0xff]
    %v151 = vld [vmem:[#allocation2 + $0x2c8] sm:$0xff]
    %v152 = vld [vmem:[#allocation2 + $0x2d0] sm:$0xff]
    %v153 = vld [vmem:[#allocation2 + $0x2d8] sm:$0xff]
    %v154 = vld [vmem:[#allocation2 + $0x2e0] sm:$0xff]
    %v155 = vld [vmem:[#allocation2 + $0x2e8] sm:$0xff]
    %v156 = vld [vmem:[#allocation2 + $0x2f0] sm:$0xff]
    %v157 = vld [vmem:[#allocation2 + $0x2f8] sm:$0xff]
    %v158 = vld [vmem:[#allocation2 + $0x300] sm:$0xff]
    %v159 = vld [vmem:[#allocation2 + $0x308] sm:$0xff]
    %v160 = vld [vmem:[#allocation2 + $0x310] sm:$0xff]
    %v161 = vld [vmem:[#allocation2 + $0x318] sm:$0xff]
    %v162 = vld [vmem:[#allocation2 + $0x320] sm:$0xff]
    %v163 = vld [vmem:[#allocation2 + $0x328] sm:$0xff]
    %v164 = vld [vmem:[#allocation2 + $0x330] sm:$0xff]
    %v165 = vld [vmem:[#allocation2 + $0x338] sm:$0xff]
    %v166 = vld [vmem:[#allocation2 + $0x340] sm:$0xff]
    %v167 = vld [vmem:[#allocation2 + $0x348] sm:$0xff]
    %v168 = vld [vmem:[#allocation2 + $0x350] sm:$0xff]
    %v169 = vld [vmem:[#allocation2 + $0x358] sm:$0xff]
    %v170 = vld [vmem:[#allocation2 + $0x360] sm:$0xff]
    %v171 = vld [vmem:[#allocation2 + $0x368] sm:$0xff]
    %v172 = vld [vmem:[#allocation2 + $0x370] sm:$0xff]
    %v173 = vld [vmem:[#allocation2 + $0x378] sm:$0xff]
    %v174 = vld [vmem:[#allocation2 + $0x380] sm:$0xff]
    %v175 = vld [vmem:[#allocation2 + $0x388] sm:$0xff]
    %v176 = vld [vmem:[#allocation2 + $0x390] sm:$0xff]
    %v177 = vld [vmem:[#allocation2 + $0x398] sm:$0xff]
    %v178 = vld [vmem:[#allocation2 + $0x3a0] sm:$0xff]
    %v179 = vld [vmem:[#allocation2 + $0x3a8] sm:$0xff]
    %v180 = vld [vmem:[#allocation2 + $0x3b0] sm:$0xff]
    %v181 = vld [vmem:[#allocation2 + $0x3b8] sm:$0xff]
    %v182 = vld [vmem:[#allocation2 + $0x3c0] sm:$0xff]
    %v183 = vld [vmem:[#allocation2 + $0x3c8] sm:$0xff]
    %v184 = vld [vmem:[#allocation2 + $0x3d0] sm:$0xff]
    %v185 = vld [vmem:[#allocation2 + $0x3d8] sm:$0xff]
    %v186 = vld [vmem:[#allocation2 + $0x3e0] sm:$0xff]
    %v187 = vld [vmem:[#allocation2 + $0x3e8] sm:$0xff]
    %v188 = vld [vmem:[#allocation2 + $0x3f0] sm:$0xff]
    %v189 = vld [vmem:[#allocation2 + $0x3f8] sm:$0xff]
    %v190 = vld [vmem:[%s3] sm:$0x3]
    %v191 = vld [vmem:[%s4] sm:$0xff]
    %v192 = vld [vmem:[%s4 + $0x8] sm:$0xff]
    %v193 = vld [vmem:[%s4 + $0x10] sm:$0xff]
    %v194 = vld [vmem:[%s4 + $0x18] sm:$0xff]
    %v195 = vld [vmem:[%s4 + $0x20] sm:$0xff]
    %v196 = vld [vmem:[%s4 + $0x28] sm:$0xff]
    %v197 = vld [vmem:[%s4 + $0x30] sm:$0xff]
    %v198 = vld [vmem:[%s4 + $0x38] sm:$0xff]
    %v199 = vld [vmem:[%s4 + $0x40] sm:$0xff]
    %v200 = vld [vmem:[%s4 + $0x48] sm:$0xff]
    %v201 = vld [vmem:[%s4 + $0x50] sm:$0xff]
    %v202 = vld [vmem:[%s4 + $0x58] sm:$0xff]
    %v203 = vld [vmem:[%s4 + $0x60] sm:$0xff]
    %v204 = vld [vmem:[%s4 + $0x68] sm:$0xff]
    %v205 = vld [vmem:[%s4 + $0x70] sm:$0xff]
    %v206 = vld [vmem:[%s4 + $0x78] sm:$0xff]
    %v207 = vld [vmem:[%s4 + $0x80] sm:$0xff]
    %v208 = vld [vmem:[%s4 + $0x88] sm:$0xff]
    %v209 = vld [vmem:[%s4 + $0x90] sm:$0xff]
    %v210 = vld [vmem:[%s4 + $0x98] sm:$0xff]
    %v211 = vld [vmem:[%s4 + $0xa0] sm:$0xff]
    %v212 = vld [vmem:[%s4 + $0xa8] sm:$0xff]
    %v213 = vld [vmem:[%s4 + $0xb0] sm:$0xff]
    %v214 = vld [vmem:[%s4 + $0xb8] sm:$0xff]
    %v215 = vld [vmem:[%s4 + $0xc0] sm:$0xff]
    %v216 = vld [vmem:[%s4 + $0xc8] sm:$0xff]
    %v217 = vld [vmem:[%s4 + $0xd0] sm:$0xff]
    %v218 = vld [vmem:[%s4 + $0xd8] sm:$0xff]
    %v219 = vld [vmem:[%s4 + $0xe0] sm:$0xff]
    %v220 = vld [vmem:[%s4 + $0xe8] sm:$0xff]
    %v221 = vld [vmem:[%s4 + $0xf0] sm:$0xff]
    %v222 = vld [vmem:[%s4 + $0xf8] sm:$0xff]
    %v223 = vld [vmem:[%s5] sm:$0x3]
    %v224 = vld [vmem:[%s6] sm:$0xf]
    %v225 = vld [vmem:[%s6 + $0x4] sm:$0xf]
    %v226 = vld [vmem:[%s6 + $0x8] sm:$0xf]
    %v227 = vld [vmem:[%s6 + $0xc] sm:$0xf]
    %v228 = vld [vmem:[%s6 + $0x10] sm:$0xf]
    %v229 = vld [vmem:[%s6 + $0x14] sm:$0xf]
    %v230 = vld [vmem:[%s6 + $0x18] sm:$0xf]
    %v231 = vld [vmem:[%s6 + $0x1c] sm:$0xf]
    %v232 = vld [vmem:[%s6 + $0x20] sm:$0xf]
    %v233 = vld [vmem:[%s6 + $0x24] sm:$0xf]
    %v234 = vld [vmem:[%s6 + $0x28] sm:$0xf]
    %v235 = vld [vmem:[%s6 + $0x2c] sm:$0xf]
    %v236 = vld [vmem:[%s6 + $0x30] sm:$0xf]
    %v237 = vld [vmem:[%s6 + $0x34] sm:$0xf]
    %v238 = vld [vmem:[%s6 + $0x38] sm:$0xf]
    %v239 = vld [vmem:[%s6 + $0x3c] sm:$0xf]
    %v240 = vld [vmem:[%s6 + $0x40] sm:$0xf]
    %v241 = vld [vmem:[%s6 + $0x44] sm:$0xf]
    %v242 = vld [vmem:[%s6 + $0x48] sm:$0xf]
    %v243 = vld [vmem:[%s6 + $0x4c] sm:$0xf]
    %v244 = vld [vmem:[%s6 + $0x50] sm:$0xf]
    %v245 = vld [vmem:[%s6 + $0x54] sm:$0xf]
    %v246 = vld [vmem:[%s6 + $0x58] sm:$0xf]
    %v247 = vld [vmem:[%s6 + $0x5c] sm:$0xf]
    %v248 = vld [vmem:[%s6 + $0x60] sm:$0xf]
    %v249 = vld [vmem:[%s6 + $0x64] sm:$0xf]
    %v250 = vld [vmem:[%s6 + $0x68] sm:$0xf]
    %v251 = vld [vmem:[%s6 + $0x6c] sm:$0xf]
    %v252 = vld [vmem:[%s6 + $0x70] sm:$0xf]
    %v253 = vld [vmem:[%s6 + $0x74] sm:$0xf]
    %v254 = vld [vmem:[%s6 + $0x78] sm:$0xf]
    %v255 = vld [vmem:[%s6 + $0x7c] sm:$0xf]
    %v256 = vld [vmem:[%s7] sm:$0x1]
    %s257 = sld [smem:[#allocation5]]
    %s258 = sld [smem:[#allocation5 + $0x1]]
    %v259 = vld [vmem:[%s0] sm:$0xff]
    %v260 = vld [vmem:[%s0 + $0x8] sm:$0xff]
    %v261 = vld [vmem:[%s0 + $0x10] sm:$0xff]
    %v262 = vld [vmem:[%s0 + $0x18] sm:$0xff]
    %v263 = vld [vmem:[%s0 + $0x20] sm:$0xff]
    %v264 = vld [vmem:[%s0 + $0x28] sm:$0xff]
    %v265 = vld [vmem:[%s0 + $0x30] sm:$0xff]
    %v266 = vld [vmem:[%s0 + $0x38] sm:$0xff]
    %v267 = vld [vmem:[%s0 + $0x40] sm:$0xff]
    %v268 = vld [vmem:[%s0 + $0x48] sm:$0xff]
    %v269 = vld [vmem:[%s0 + $0x50] sm:$0xff]
    %v270 = vld [vmem:[%s0 + $0x58] sm:$0xff]
    %v271 = vld [vmem:[%s0 + $0x60] sm:$0xff]
    %v272 = vld [vmem:[%s0 + $0x68] sm:$0xff]
    %v273 = vld [vmem:[%s0 + $0x70] sm:$0xff]
    %v274 = vld [vmem:[%s0 + $0x78] sm:$0xff]
    %v275 = vpack.c.bf16 %v267, %v259
    %v276 = vpack.c.bf16 %v268, %v260
    %v277 = vpack.c.bf16 %v269, %v261
    %v278 = vpack.c.bf16 %v270, %v262
    %v279 = vpack.c.bf16 %v271, %v263
    %v280 = vpack.c.bf16 %v272, %v264
    %v281 = vpack.c.bf16 %v273, %v265
    %v282 = vpack.c.bf16 %v274, %v266
    %v284 = vlaneseq
    %v285 = vshrl.u32 %v284, 7
    %v286 = vsub.s32 0, %v285
    %v287 = vrot.slane %v190, %v286
    %v288 = vlaneseq
    %v289 = vshrl.u32 %v288, 7
    %v290 = vsub.s32 1, %v289
    %v291 = vrot.slane %v190, %v290
    %v422 = vunpack.c.l.b16 %v62
    %v423 = vunpack.c.h.b16 %v62
    %v424 = vunpack.c.l.b16 %v63
    %v425 = vunpack.c.h.b16 %v63
    %v426 = vunpack.c.l.b16 %v64
    %v427 = vunpack.c.h.b16 %v64
    %v428 = vunpack.c.l.b16 %v65
    %v429 = vunpack.c.h.b16 %v65
    %v430 = vunpack.c.l.b16 %v66
    %v431 = vunpack.c.h.b16 %v66
    %v432 = vunpack.c.l.b16 %v67
    %v433 = vunpack.c.h.b16 %v67
    %v434 = vunpack.c.l.b16 %v68
    %v435 = vunpack.c.h.b16 %v68
    %v436 = vunpack.c.l.b16 %v69
    %v437 = vunpack.c.h.b16 %v69
    %v438 = vunpack.c.l.b16 %v70
    %v439 = vunpack.c.h.b16 %v70
    %v440 = vunpack.c.l.b16 %v71
    %v441 = vunpack.c.h.b16 %v71
    %v442 = vunpack.c.l.b16 %v72
    %v443 = vunpack.c.h.b16 %v72
    %v444 = vunpack.c.l.b16 %v73
    %v445 = vunpack.c.h.b16 %v73
    %v446 = vunpack.c.l.b16 %v74
    %v447 = vunpack.c.h.b16 %v74
    %v448 = vunpack.c.l.b16 %v75
    %v449 = vunpack.c.h.b16 %v75
    %v450 = vunpack.c.l.b16 %v76
    %v451 = vunpack.c.h.b16 %v76
    %v452 = vunpack.c.l.b16 %v77
    %v453 = vunpack.c.h.b16 %v77
    %v454 = vunpack.c.l.b16 %v78
    %v455 = vunpack.c.h.b16 %v78
    %v456 = vunpack.c.l.b16 %v79
    %v457 = vunpack.c.h.b16 %v79
    %v458 = vunpack.c.l.b16 %v80
    %v459 = vunpack.c.h.b16 %v80
    %v460 = vunpack.c.l.b16 %v81
    %v461 = vunpack.c.h.b16 %v81
    %v462 = vunpack.c.l.b16 %v82
    %v463 = vunpack.c.h.b16 %v82
    %v464 = vunpack.c.l.b16 %v83
    %v465 = vunpack.c.h.b16 %v83
    %v466 = vunpack.c.l.b16 %v84
    %v467 = vunpack.c.h.b16 %v84
    %v468 = vunpack.c.l.b16 %v85
    %v469 = vunpack.c.h.b16 %v85
    %v470 = vunpack.c.l.b16 %v86
    %v471 = vunpack.c.h.b16 %v86
    %v472 = vunpack.c.l.b16 %v87
    %v473 = vunpack.c.h.b16 %v87
    %v474 = vunpack.c.l.b16 %v88
    %v475 = vunpack.c.h.b16 %v88
    %v476 = vunpack.c.l.b16 %v89
    %v477 = vunpack.c.h.b16 %v89
    %v478 = vunpack.c.l.b16 %v90
    %v479 = vunpack.c.h.b16 %v90
    %v480 = vunpack.c.l.b16 %v91
    %v481 = vunpack.c.h.b16 %v91
    %v482 = vunpack.c.l.b16 %v92
    %v483 = vunpack.c.h.b16 %v92
    %v484 = vunpack.c.l.b16 %v93
    %v485 = vunpack.c.h.b16 %v93
    %v486 = vunpack.c.l.b16 %v94
    %v487 = vunpack.c.h.b16 %v94
    %v488 = vunpack.c.l.b16 %v95
    %v489 = vunpack.c.h.b16 %v95
    %v490 = vunpack.c.l.b16 %v96
    %v491 = vunpack.c.h.b16 %v96
    %v492 = vunpack.c.l.b16 %v97
    %v493 = vunpack.c.h.b16 %v97
    %v494 = vunpack.c.l.b16 %v98
    %v495 = vunpack.c.h.b16 %v98
    %v496 = vunpack.c.l.b16 %v99
    %v497 = vunpack.c.h.b16 %v99
    %v498 = vunpack.c.l.b16 %v100
    %v499 = vunpack.c.h.b16 %v100
    %v500 = vunpack.c.l.b16 %v101
    %v501 = vunpack.c.h.b16 %v101
    %v502 = vunpack.c.l.b16 %v102
    %v503 = vunpack.c.h.b16 %v102
    %v504 = vunpack.c.l.b16 %v103
    %v505 = vunpack.c.h.b16 %v103
    %v506 = vunpack.c.l.b16 %v104
    %v507 = vunpack.c.h.b16 %v104
    %v508 = vunpack.c.l.b16 %v105
    %v509 = vunpack.c.h.b16 %v105
    %v510 = vunpack.c.l.b16 %v106
    %v511 = vunpack.c.h.b16 %v106
    %v512 = vunpack.c.l.b16 %v107
    %v513 = vunpack.c.h.b16 %v107
    %v514 = vunpack.c.l.b16 %v108
    %v515 = vunpack.c.h.b16 %v108
    %v516 = vunpack.c.l.b16 %v109
    %v517 = vunpack.c.h.b16 %v109
    %v518 = vunpack.c.l.b16 %v110
    %v519 = vunpack.c.h.b16 %v110
    %v520 = vunpack.c.l.b16 %v111
    %v521 = vunpack.c.h.b16 %v111
    %v522 = vunpack.c.l.b16 %v112
    %v523 = vunpack.c.h.b16 %v112
    %v524 = vunpack.c.l.b16 %v113
    %v525 = vunpack.c.h.b16 %v113
    %v526 = vunpack.c.l.b16 %v114
    %v527 = vunpack.c.h.b16 %v114
    %v528 = vunpack.c.l.b16 %v115
    %v529 = vunpack.c.h.b16 %v115
    %v530 = vunpack.c.l.b16 %v116
    %v531 = vunpack.c.h.b16 %v116
    %v532 = vunpack.c.l.b16 %v117
    %v533 = vunpack.c.h.b16 %v117
    %v534 = vunpack.c.l.b16 %v118
    %v535 = vunpack.c.h.b16 %v118
    %v536 = vunpack.c.l.b16 %v119
    %v537 = vunpack.c.h.b16 %v119
    %v538 = vunpack.c.l.b16 %v120
    %v539 = vunpack.c.h.b16 %v120
    %v540 = vunpack.c.l.b16 %v121
    %v541 = vunpack.c.h.b16 %v121
    %v542 = vunpack.c.l.b16 %v122
    %v543 = vunpack.c.h.b16 %v122
    %v544 = vunpack.c.l.b16 %v123
    %v545 = vunpack.c.h.b16 %v123
    %v546 = vunpack.c.l.b16 %v124
    %v547 = vunpack.c.h.b16 %v124
    %v548 = vunpack.c.l.b16 %v125
    %v549 = vunpack.c.h.b16 %v125
    %v550 = vunpack.c.l.b16 %v126
    %v551 = vunpack.c.h.b16 %v126
    %v552 = vunpack.c.l.b16 %v127
    %v553 = vunpack.c.h.b16 %v127
    %v554 = vunpack.c.l.b16 %v128
    %v555 = vunpack.c.h.b16 %v128
    %v556 = vunpack.c.l.b16 %v129
    %v557 = vunpack.c.h.b16 %v129
    %v558 = vunpack.c.l.b16 %v130
    %v559 = vunpack.c.h.b16 %v130
    %v560 = vunpack.c.l.b16 %v131
    %v561 = vunpack.c.h.b16 %v131
    %v562 = vunpack.c.l.b16 %v132
    %v563 = vunpack.c.h.b16 %v132
    %v564 = vunpack.c.l.b16 %v133
    %v565 = vunpack.c.h.b16 %v133
    %v566 = vunpack.c.l.b16 %v134
    %v567 = vunpack.c.h.b16 %v134
    %v568 = vunpack.c.l.b16 %v135
    %v569 = vunpack.c.h.b16 %v135
    %v570 = vunpack.c.l.b16 %v136
    %v571 = vunpack.c.h.b16 %v136
    %v572 = vunpack.c.l.b16 %v137
    %v573 = vunpack.c.h.b16 %v137
    %v574 = vunpack.c.l.b16 %v138
    %v575 = vunpack.c.h.b16 %v138
    %v576 = vunpack.c.l.b16 %v139
    %v577 = vunpack.c.h.b16 %v139
    %v578 = vunpack.c.l.b16 %v140
    %v579 = vunpack.c.h.b16 %v140
    %v580 = vunpack.c.l.b16 %v141
    %v581 = vunpack.c.h.b16 %v141
    %v582 = vunpack.c.l.b16 %v142
    %v583 = vunpack.c.h.b16 %v142
    %v584 = vunpack.c.l.b16 %v143
    %v585 = vunpack.c.h.b16 %v143
    %v586 = vunpack.c.l.b16 %v144
    %v587 = vunpack.c.h.b16 %v144
    %v588 = vunpack.c.l.b16 %v145
    %v589 = vunpack.c.h.b16 %v145
    %v590 = vunpack.c.l.b16 %v146
    %v591 = vunpack.c.h.b16 %v146
    %v592 = vunpack.c.l.b16 %v147
    %v593 = vunpack.c.h.b16 %v147
    %v594 = vunpack.c.l.b16 %v148
    %v595 = vunpack.c.h.b16 %v148
    %v596 = vunpack.c.l.b16 %v149
    %v597 = vunpack.c.h.b16 %v149
    %v598 = vunpack.c.l.b16 %v150
    %v599 = vunpack.c.h.b16 %v150
    %v600 = vunpack.c.l.b16 %v151
    %v601 = vunpack.c.h.b16 %v151
    %v602 = vunpack.c.l.b16 %v152
    %v603 = vunpack.c.h.b16 %v152
    %v604 = vunpack.c.l.b16 %v153
    %v605 = vunpack.c.h.b16 %v153
    %v606 = vunpack.c.l.b16 %v154
    %v607 = vunpack.c.h.b16 %v154
    %v608 = vunpack.c.l.b16 %v155
    %v609 = vunpack.c.h.b16 %v155
    %v610 = vunpack.c.l.b16 %v156
    %v611 = vunpack.c.h.b16 %v156
    %v612 = vunpack.c.l.b16 %v157
    %v613 = vunpack.c.h.b16 %v157
    %v614 = vunpack.c.l.b16 %v158
    %v615 = vunpack.c.h.b16 %v158
    %v616 = vunpack.c.l.b16 %v159
    %v617 = vunpack.c.h.b16 %v159
    %v618 = vunpack.c.l.b16 %v160
    %v619 = vunpack.c.h.b16 %v160
    %v620 = vunpack.c.l.b16 %v161
    %v621 = vunpack.c.h.b16 %v161
    %v622 = vunpack.c.l.b16 %v162
    %v623 = vunpack.c.h.b16 %v162
    %v624 = vunpack.c.l.b16 %v163
    %v625 = vunpack.c.h.b16 %v163
    %v626 = vunpack.c.l.b16 %v164
    %v627 = vunpack.c.h.b16 %v164
    %v628 = vunpack.c.l.b16 %v165
    %v629 = vunpack.c.h.b16 %v165
    %v630 = vunpack.c.l.b16 %v166
    %v631 = vunpack.c.h.b16 %v166
    %v632 = vunpack.c.l.b16 %v167
    %v633 = vunpack.c.h.b16 %v167
    %v634 = vunpack.c.l.b16 %v168
    %v635 = vunpack.c.h.b16 %v168
    %v636 = vunpack.c.l.b16 %v169
    %v637 = vunpack.c.h.b16 %v169
    %v638 = vunpack.c.l.b16 %v170
    %v639 = vunpack.c.h.b16 %v170
    %v640 = vunpack.c.l.b16 %v171
    %v641 = vunpack.c.h.b16 %v171
    %v642 = vunpack.c.l.b16 %v172
    %v643 = vunpack.c.h.b16 %v172
    %v644 = vunpack.c.l.b16 %v173
    %v645 = vunpack.c.h.b16 %v173
    %v646 = vunpack.c.l.b16 %v174
    %v647 = vunpack.c.h.b16 %v174
    %v648 = vunpack.c.l.b16 %v175
    %v649 = vunpack.c.h.b16 %v175
    %v650 = vunpack.c.l.b16 %v176
    %v651 = vunpack.c.h.b16 %v176
    %v652 = vunpack.c.l.b16 %v177
    %v653 = vunpack.c.h.b16 %v177
    %v654 = vunpack.c.l.b16 %v178
    %v655 = vunpack.c.h.b16 %v178
    %v656 = vunpack.c.l.b16 %v179
    %v657 = vunpack.c.h.b16 %v179
    %v658 = vunpack.c.l.b16 %v180
    %v659 = vunpack.c.h.b16 %v180
    %v660 = vunpack.c.l.b16 %v181
    %v661 = vunpack.c.h.b16 %v181
    %v662 = vunpack.c.l.b16 %v182
    %v663 = vunpack.c.h.b16 %v182
    %v664 = vunpack.c.l.b16 %v183
    %v665 = vunpack.c.h.b16 %v183
    %v666 = vunpack.c.l.b16 %v184
    %v667 = vunpack.c.h.b16 %v184
    %v668 = vunpack.c.l.b16 %v185
    %v669 = vunpack.c.h.b16 %v185
    %v670 = vunpack.c.l.b16 %v186
    %v671 = vunpack.c.h.b16 %v186
    %v672 = vunpack.c.l.b16 %v187
    %v673 = vunpack.c.h.b16 %v187
    %v674 = vunpack.c.l.b16 %v188
    %v675 = vunpack.c.h.b16 %v188
    %v676 = vunpack.c.l.b16 %v189
    %v677 = vunpack.c.h.b16 %v189
    %v678 = vpack.c.b16 %v424, %v422
    %v679 = vpack.c.b16 %v425, %v423
    %v680 = vpack.c.b16 %v428, %v426
    %v681 = vpack.c.b16 %v429, %v427
    %v682 = vpack.c.b16 %v432, %v430
    %v683 = vpack.c.b16 %v433, %v431
    %v684 = vpack.c.b16 %v436, %v434
    %v685 = vpack.c.b16 %v437, %v435
    %v686 = vpack.c.b16 %v440, %v438
    %v687 = vpack.c.b16 %v441, %v439
    %v688 = vpack.c.b16 %v444, %v442
    %v689 = vpack.c.b16 %v445, %v443
    %v690 = vpack.c.b16 %v448, %v446
    %v691 = vpack.c.b16 %v449, %v447
    %v692 = vpack.c.b16 %v452, %v450
    %v693 = vpack.c.b16 %v453, %v451
    %v694 = vpack.c.b16 %v456, %v454
    %v695 = vpack.c.b16 %v457, %v455
    %v696 = vpack.c.b16 %v460, %v458
    %v697 = vpack.c.b16 %v461, %v459
    %v698 = vpack.c.b16 %v464, %v462
    %v699 = vpack.c.b16 %v465, %v463
    %v700 = vpack.c.b16 %v468, %v466
    %v701 = vpack.c.b16 %v469, %v467
    %v702 = vpack.c.b16 %v472, %v470
    %v703 = vpack.c.b16 %v473, %v471
    %v704 = vpack.c.b16 %v476, %v474
    %v705 = vpack.c.b16 %v477, %v475
    %v706 = vpack.c.b16 %v480, %v478
    %v707 = vpack.c.b16 %v481, %v479
    %v708 = vpack.c.b16 %v484, %v482
    %v709 = vpack.c.b16 %v485, %v483
    %v710 = vpack.c.b16 %v488, %v486
    %v711 = vpack.c.b16 %v489, %v487
    %v712 = vpack.c.b16 %v492, %v490
    %v713 = vpack.c.b16 %v493, %v491
    %v714 = vpack.c.b16 %v496, %v494
    %v715 = vpack.c.b16 %v497, %v495
    %v716 = vpack.c.b16 %v500, %v498
    %v717 = vpack.c.b16 %v501, %v499
    %v718 = vpack.c.b16 %v504, %v502
    %v719 = vpack.c.b16 %v505, %v503
    %v720 = vpack.c.b16 %v508, %v506
    %v721 = vpack.c.b16 %v509, %v507
    %v722 = vpack.c.b16 %v512, %v510
    %v723 = vpack.c.b16 %v513, %v511
    %v724 = vpack.c.b16 %v516, %v514
    %v725 = vpack.c.b16 %v517, %v515
    %v726 = vpack.c.b16 %v520, %v518
    %v727 = vpack.c.b16 %v521, %v519
    %v728 = vpack.c.b16 %v524, %v522
    %v729 = vpack.c.b16 %v525, %v523
    %v730 = vpack.c.b16 %v528, %v526
    %v731 = vpack.c.b16 %v529, %v527
    %v732 = vpack.c.b16 %v532, %v530
    %v733 = vpack.c.b16 %v533, %v531
    %v734 = vpack.c.b16 %v536, %v534
    %v735 = vpack.c.b16 %v537, %v535
    %v736 = vpack.c.b16 %v540, %v538
    %v737 = vpack.c.b16 %v541, %v539
    %v738 = vpack.c.b16 %v544, %v542
    %v739 = vpack.c.b16 %v545, %v543
    %v740 = vpack.c.b16 %v548, %v546
    %v741 = vpack.c.b16 %v549, %v547
    %v742 = vpack.c.b16 %v552, %v550
    %v743 = vpack.c.b16 %v553, %v551
    %v744 = vpack.c.b16 %v556, %v554
    %v745 = vpack.c.b16 %v557, %v555
    %v746 = vpack.c.b16 %v560, %v558
    %v747 = vpack.c.b16 %v561, %v559
    %v748 = vpack.c.b16 %v564, %v562
    %v749 = vpack.c.b16 %v565, %v563
    %v750 = vpack.c.b16 %v568, %v566
    %v751 = vpack.c.b16 %v569, %v567
    %v752 = vpack.c.b16 %v572, %v570
    %v753 = vpack.c.b16 %v573, %v571
    %v754 = vpack.c.b16 %v576, %v574
    %v755 = vpack.c.b16 %v577, %v575
    %v756 = vpack.c.b16 %v580, %v578
    %v757 = vpack.c.b16 %v581, %v579
    %v758 = vpack.c.b16 %v584, %v582
    %v759 = vpack.c.b16 %v585, %v583
    %v760 = vpack.c.b16 %v588, %v586
    %v761 = vpack.c.b16 %v589, %v587
    %v762 = vpack.c.b16 %v592, %v590
    %v763 = vpack.c.b16 %v593, %v591
    %v764 = vpack.c.b16 %v596, %v594
    %v765 = vpack.c.b16 %v597, %v595
    %v766 = vpack.c.b16 %v600, %v598
    %v767 = vpack.c.b16 %v601, %v599
    %v768 = vpack.c.b16 %v604, %v602
    %v769 = vpack.c.b16 %v605, %v603
    %v770 = vpack.c.b16 %v608, %v606
    %v771 = vpack.c.b16 %v609, %v607
    %v772 = vpack.c.b16 %v612, %v610
    %v773 = vpack.c.b16 %v613, %v611
    %v774 = vpack.c.b16 %v616, %v614
    %v775 = vpack.c.b16 %v617, %v615
    %v776 = vpack.c.b16 %v620, %v618
    %v777 = vpack.c.b16 %v621, %v619
    %v778 = vpack.c.b16 %v624, %v622
    %v779 = vpack.c.b16 %v625, %v623
    %v780 = vpack.c.b16 %v628, %v626
    %v781 = vpack.c.b16 %v629, %v627
    %v782 = vpack.c.b16 %v632, %v630
    %v783 = vpack.c.b16 %v633, %v631
    %v784 = vpack.c.b16 %v636, %v634
    %v785 = vpack.c.b16 %v637, %v635
    %v786 = vpack.c.b16 %v640, %v638
    %v787 = vpack.c.b16 %v641, %v639
    %v788 = vpack.c.b16 %v644, %v642
    %v789 = vpack.c.b16 %v645, %v643
    %v790 = vpack.c.b16 %v648, %v646
    %v791 = vpack.c.b16 %v649, %v647
    %v792 = vpack.c.b16 %v652, %v650
    %v793 = vpack.c.b16 %v653, %v651
    %v794 = vpack.c.b16 %v656, %v654
    %v795 = vpack.c.b16 %v657, %v655
    %v796 = vpack.c.b16 %v660, %v658
    %v797 = vpack.c.b16 %v661, %v659
    %v798 = vpack.c.b16 %v664, %v662
    %v799 = vpack.c.b16 %v665, %v663
    %v800 = vpack.c.b16 %v668, %v666
    %v801 = vpack.c.b16 %v669, %v667
    %v802 = vpack.c.b16 %v672, %v670
    %v803 = vpack.c.b16 %v673, %v671
    %v804 = vpack.c.b16 %v676, %v674
    %v805 = vpack.c.b16 %v677, %v675
    %934 = vmatprep.subr.bf16.mxu0 %v679
    %935 = vmatpush1.bf16.msra.mxu0 %v678
    %936 = vmatprep.subr.bf16.mxu0 %v681
    %937 = vmatpush1.bf16.msra.mxu0 %v680
    %938 = vmatprep.subr.bf16.mxu0 %v683
    %939 = vmatpush1.bf16.msra.mxu0 %v682
    %940 = vmatprep.subr.bf16.mxu0 %v685
    %941 = vmatpush1.bf16.msra.mxu0 %v684
    %942 = vmatprep.subr.bf16.mxu0 %v687
    %943 = vmatpush1.bf16.msra.mxu0 %v686
    %944 = vmatprep.subr.bf16.mxu0 %v689
    %945 = vmatpush1.bf16.msra.mxu0 %v688
    %946 = vmatprep.subr.bf16.mxu0 %v691
    %947 = vmatpush1.bf16.msra.mxu0 %v690
    %948 = vmatprep.subr.bf16.mxu0 %v693
    %949 = vmatpush1.bf16.msra.mxu0 %v692
    %950 = vmatprep.subr.bf16.mxu0 %v695
    %951 = vmatpush1.bf16.msra.mxu0 %v694
    %952 = vmatprep.subr.bf16.mxu0 %v697
    %953 = vmatpush1.bf16.msra.mxu0 %v696
    %954 = vmatprep.subr.bf16.mxu0 %v699
    %955 = vmatpush1.bf16.msra.mxu0 %v698
    %956 = vmatprep.subr.bf16.mxu0 %v701
    %957 = vmatpush1.bf16.msra.mxu0 %v700
    %958 = vmatprep.subr.bf16.mxu0 %v703
    %959 = vmatpush1.bf16.msra.mxu0 %v702
    %960 = vmatprep.subr.bf16.mxu0 %v705
    %961 = vmatpush1.bf16.msra.mxu0 %v704
    %962 = vmatprep.subr.bf16.mxu0 %v707
    %963 = vmatpush1.bf16.msra.mxu0 %v706
    %964 = vmatprep.subr.bf16.mxu0 %v709
    %965 = vmatpush1.bf16.msra.mxu0 %v708
    %966 = vmatprep.mubr.bf16.mxu0 %v276
    %967 = vmatmul.mubr.bf16.gmra.mrb[0].mxu0 %v275
    %v968 = vpop.f32.mrb[0].mxu0
    %v969 = vadd.f32 %v287, %v968
    %v970 = vpop.f32.mrb[0].mxu0
    %v971 = vadd.f32 %v291, %v970
    %v972 = vpop.f32.mrb[0].mxu0
    %v973 = vadd.f32 %v287, %v972
    %v974 = vpop.f32.mrb[0].mxu0
    %v975 = vadd.f32 %v291, %v974
    %976 = vdwg.mxu0
    %977 = vmatprep.subr.bf16.mxu0 %v711
    %978 = vmatpush1.bf16.msra.mxu0 %v710
    %979 = vmatprep.subr.bf16.mxu0 %v713
    %980 = vmatpush1.bf16.msra.mxu0 %v712
    %981 = vmatprep.subr.bf16.mxu0 %v715
    %982 = vmatpush1.bf16.msra.mxu0 %v714
    %983 = vmatprep.subr.bf16.mxu0 %v717
    %984 = vmatpush1.bf16.msra.mxu0 %v716
    %985 = vmatprep.subr.bf16.mxu0 %v719
    %986 = vmatpush1.bf16.msra.mxu0 %v718
    %987 = vmatprep.subr.bf16.mxu0 %v721
    %988 = vmatpush1.bf16.msra.mxu0 %v720
    %989 = vmatprep.subr.bf16.mxu0 %v723
    %990 = vmatpush1.bf16.msra.mxu0 %v722
    %991 = vmatprep.subr.bf16.mxu0 %v725
    %992 = vmatpush1.bf16.msra.mxu0 %v724
    %993 = vmatprep.subr.bf16.mxu0 %v727
    %994 = vmatpush1.bf16.msra.mxu0 %v726
    %995 = vmatprep.subr.bf16.mxu0 %v729
    %996 = vmatpush1.bf16.msra.mxu0 %v728
    %997 = vmatprep.subr.bf16.mxu0 %v731
    %998 = vmatpush1.bf16.msra.mxu0 %v730
    %999 = vmatprep.subr.bf16.mxu0 %v733
    %1000 = vmatpush1.bf16.msra.mxu0 %v732
    %1001 = vmatprep.subr.bf16.mxu0 %v735
    %1002 = vmatpush1.bf16.msra.mxu0 %v734
    %1003 = vmatprep.subr.bf16.mxu0 %v737
    %1004 = vmatpush1.bf16.msra.mxu0 %v736
    %1005 = vmatprep.subr.bf16.mxu0 %v739
    %1006 = vmatpush1.bf16.msra.mxu0 %v738
    %1007 = vmatprep.subr.bf16.mxu0 %v741
    %1008 = vmatpush1.bf16.msra.mxu0 %v740
    %1009 = vmatprep.mubr.bf16.mxu0 %v278
    %1010 = vmatmul.mubr.bf16.gmra.mrb[0].mxu0 %v277
    %v1011 = vpop.f32.mrb[0].mxu0
    %v1012 = vadd.f32 %v969, %v1011
    %v1013 = vpop.f32.mrb[0].mxu0
    %v1014 = vadd.f32 %v971, %v1013
    %v1015 = vpop.f32.mrb[0].mxu0
    %v1016 = vadd.f32 %v973, %v1015
    %v1017 = vpop.f32.mrb[0].mxu0
    %v1018 = vadd.f32 %v975, %v1017
    %1019 = vdwg.mxu0
    %1020 = vmatprep.subr.bf16.mxu0 %v743
    %1021 = vmatpush1.bf16.msra.mxu0 %v742
    %1022 = vmatprep.subr.bf16.mxu0 %v745
    %1023 = vmatpush1.bf16.msra.mxu0 %v744
    %1024 = vmatprep.subr.bf16.mxu0 %v747
    %1025 = vmatpush1.bf16.msra.mxu0 %v746
    %1026 = vmatprep.subr.bf16.mxu0 %v749
    %1027 = vmatpush1.bf16.msra.mxu0 %v748
    %1028 = vmatprep.subr.bf16.mxu0 %v751
    %1029 = vmatpush1.bf16.msra.mxu0 %v750
    %1030 = vmatprep.subr.bf16.mxu0 %v753
    %1031 = vmatpush1.bf16.msra.mxu0 %v752
    %1032 = vmatprep.subr.bf16.mxu0 %v755
    %1033 = vmatpush1.bf16.msra.mxu0 %v754
    %1034 = vmatprep.subr.bf16.mxu0 %v757
    %1035 = vmatpush1.bf16.msra.mxu0 %v756
    %1036 = vmatprep.subr.bf16.mxu0 %v759
    %1037 = vmatpush1.bf16.msra.mxu0 %v758
    %1038 = vmatprep.subr.bf16.mxu0 %v761
    %1039 = vmatpush1.bf16.msra.mxu0 %v760
    %1040 = vmatprep.subr.bf16.mxu0 %v763
    %1041 = vmatpush1.bf16.msra.mxu0 %v762
    %1042 = vmatprep.subr.bf16.mxu0 %v765
    %1043 = vmatpush1.bf16.msra.mxu0 %v764
    %1044 = vmatprep.subr.bf16.mxu0 %v767
    %1045 = vmatpush1.bf16.msra.mxu0 %v766
    %1046 = vmatprep.subr.bf16.mxu0 %v769
    %1047 = vmatpush1.bf16.msra.mxu0 %v768
    %1048 = vmatprep.subr.bf16.mxu0 %v771
    %1049 = vmatpush1.bf16.msra.mxu0 %v770
    %1050 = vmatprep.subr.bf16.mxu0 %v773
    %1051 = vmatpush1.bf16.msra.mxu0 %v772
    %1052 = vmatprep.mubr.bf16.mxu0 %v280
    %1053 = vmatmul.mubr.bf16.gmra.mrb[0].mxu0 %v279
    %v1054 = vpop.f32.mrb[0].mxu0
    %v1055 = vadd.f32 %v1012, %v1054
    %v1056 = vpop.f32.mrb[0].mxu0
    %v1057 = vadd.f32 %v1014, %v1056
    %v1058 = vpop.f32.mrb[0].mxu0
    %v1059 = vadd.f32 %v1016, %v1058
    %v1060 = vpop.f32.mrb[0].mxu0
    %v1061 = vadd.f32 %v1018, %v1060
    %1062 = vdwg.mxu0
    %1063 = vmatprep.subr.bf16.mxu0 %v775
    %1064 = vmatpush1.bf16.msra.mxu0 %v774
    %1065 = vmatprep.subr.bf16.mxu0 %v777
    %1066 = vmatpush1.bf16.msra.mxu0 %v776
    %1067 = vmatprep.subr.bf16.mxu0 %v779
    %1068 = vmatpush1.bf16.msra.mxu0 %v778
    %1069 = vmatprep.subr.bf16.mxu0 %v781
    %1070 = vmatpush1.bf16.msra.mxu0 %v780
    %1071 = vmatprep.subr.bf16.mxu0 %v783
    %1072 = vmatpush1.bf16.msra.mxu0 %v782
    %1073 = vmatprep.subr.bf16.mxu0 %v785
    %1074 = vmatpush1.bf16.msra.mxu0 %v784
    %1075 = vmatprep.subr.bf16.mxu0 %v787
    %1076 = vmatpush1.bf16.msra.mxu0 %v786
    %1077 = vmatprep.subr.bf16.mxu0 %v789
    %1078 = vmatpush1.bf16.msra.mxu0 %v788
    %1079 = vmatprep.subr.bf16.mxu0 %v791
    %1080 = vmatpush1.bf16.msra.mxu0 %v790
    %1081 = vmatprep.subr.bf16.mxu0 %v793
    %1082 = vmatpush1.bf16.msra.mxu0 %v792
    %1083 = vmatprep.subr.bf16.mxu0 %v795
    %1084 = vmatpush1.bf16.msra.mxu0 %v794
    %1085 = vmatprep.subr.bf16.mxu0 %v797
    %1086 = vmatpush1.bf16.msra.mxu0 %v796
    %1087 = vmatprep.subr.bf16.mxu0 %v799
    %1088 = vmatpush1.bf16.msra.mxu0 %v798
    %1089 = vmatprep.subr.bf16.mxu0 %v801
    %1090 = vmatpush1.bf16.msra.mxu0 %v800
    %1091 = vmatprep.subr.bf16.mxu0 %v803
    %1092 = vmatpush1.bf16.msra.mxu0 %v802
    %1093 = vmatprep.subr.bf16.mxu0 %v805
    %1094 = vmatpush1.bf16.msra.mxu0 %v804
    %1095 = vmatprep.mubr.bf16.mxu0 %v282
    %1096 = vmatmul.mubr.bf16.gmra.mrb[0].mxu0 %v281
    %v1097 = vpop.f32.mrb[0].mxu0
    %v1098 = vadd.f32 %v1055, %v1097
    %v1099 = vpop.f32.mrb[0].mxu0
    %v1100 = vadd.f32 %v1057, %v1099
    %v1101 = vpop.f32.mrb[0].mxu0
    %v1102 = vadd.f32 %v1059, %v1101
    %v1103 = vpop.f32.mrb[0].mxu0
    %v1104 = vadd.f32 %v1061, %v1103
    %1105 = vdwg.mxu0
    %vm1106 = vcmp.gt.f32.partialorder %v1098, 0.0
    %vm1107 = vcmp.gt.f32.partialorder %v1100, 0.0
    %vm1108 = vcmp.gt.f32.partialorder %v1102, 0.0
    %vm1109 = vcmp.gt.f32.partialorder %v1104, 0.0
    %v1110 = vstv %s257
    %v1111 = vmul.f32 %v1110, %v1098
    %v1112 = vmul.f32 %v1110, %v1100
    %v1113 = vmul.f32 %v1110, %v1102
    %v1114 = vmul.f32 %v1110, %v1104
    %v1115 = vsel %vm1106, %v1098, %v1111
    %v1116 = vsel %vm1107, %v1100, %v1112
    %v1117 = vsel %vm1108, %v1102, %v1113
    %v1118 = vsel %vm1109, %v1104, %v1114
    %v1119 = vpack.c.bf16 %v1117, %v1115
    %v1120 = vpack.c.bf16 %v1118, %v1116
    %v1122 = vlaneseq
    %v1123 = vshrl.u32 %v1122, 7
    %v1124 = vsub.s32 0, %v1123
    %v1125 = vrot.slane %v223, %v1124
    %v1126 = vlaneseq
    %v1127 = vshrl.u32 %v1126, 7
    %v1128 = vsub.s32 1, %v1127
    %v1129 = vrot.slane %v223, %v1128
    %v1164 = vunpack.c.l.b16 %v191
    %v1165 = vunpack.c.h.b16 %v191
    %v1166 = vunpack.c.l.b16 %v192
    %v1167 = vunpack.c.h.b16 %v192
    %v1168 = vunpack.c.l.b16 %v193
    %v1169 = vunpack.c.h.b16 %v193
    %v1170 = vunpack.c.l.b16 %v194
    %v1171 = vunpack.c.h.b16 %v194
    %v1172 = vunpack.c.l.b16 %v195
    %v1173 = vunpack.c.h.b16 %v195
    %v1174 = vunpack.c.l.b16 %v196
    %v1175 = vunpack.c.h.b16 %v196
    %v1176 = vunpack.c.l.b16 %v197
    %v1177 = vunpack.c.h.b16 %v197
    %v1178 = vunpack.c.l.b16 %v198
    %v1179 = vunpack.c.h.b16 %v198
    %v1180 = vunpack.c.l.b16 %v199
    %v1181 = vunpack.c.h.b16 %v199
    %v1182 = vunpack.c.l.b16 %v200
    %v1183 = vunpack.c.h.b16 %v200
    %v1184 = vunpack.c.l.b16 %v201
    %v1185 = vunpack.c.h.b16 %v201
    %v1186 = vunpack.c.l.b16 %v202
    %v1187 = vunpack.c.h.b16 %v202
    %v1188 = vunpack.c.l.b16 %v203
    %v1189 = vunpack.c.h.b16 %v203
    %v1190 = vunpack.c.l.b16 %v204
    %v1191 = vunpack.c.h.b16 %v204
    %v1192 = vunpack.c.l.b16 %v205
    %v1193 = vunpack.c.h.b16 %v205
    %v1194 = vunpack.c.l.b16 %v206
    %v1195 = vunpack.c.h.b16 %v206
    %v1196 = vunpack.c.l.b16 %v207
    %v1197 = vunpack.c.h.b16 %v207
    %v1198 = vunpack.c.l.b16 %v208
    %v1199 = vunpack.c.h.b16 %v208
    %v1200 = vunpack.c.l.b16 %v209
    %v1201 = vunpack.c.h.b16 %v209
    %v1202 = vunpack.c.l.b16 %v210
    %v1203 = vunpack.c.h.b16 %v210
    %v1204 = vunpack.c.l.b16 %v211
    %v1205 = vunpack.c.h.b16 %v211
    %v1206 = vunpack.c.l.b16 %v212
    %v1207 = vunpack.c.h.b16 %v212
    %v1208 = vunpack.c.l.b16 %v213
    %v1209 = vunpack.c.h.b16 %v213
    %v1210 = vunpack.c.l.b16 %v214
    %v1211 = vunpack.c.h.b16 %v214
    %v1212 = vunpack.c.l.b16 %v215
    %v1213 = vunpack.c.h.b16 %v215
    %v1214 = vunpack.c.l.b16 %v216
    %v1215 = vunpack.c.h.b16 %v216
    %v1216 = vunpack.c.l.b16 %v217
    %v1217 = vunpack.c.h.b16 %v217
    %v1218 = vunpack.c.l.b16 %v218
    %v1219 = vunpack.c.h.b16 %v218
    %v1220 = vunpack.c.l.b16 %v219
    %v1221 = vunpack.c.h.b16 %v219
    %v1222 = vunpack.c.l.b16 %v220
    %v1223 = vunpack.c.h.b16 %v220
    %v1224 = vunpack.c.l.b16 %v221
    %v1225 = vunpack.c.h.b16 %v221
    %v1226 = vunpack.c.l.b16 %v222
    %v1227 = vunpack.c.h.b16 %v222
    %v1228 = vpack.c.b16 %v1166, %v1164
    %v1229 = vpack.c.b16 %v1167, %v1165
    %v1230 = vpack.c.b16 %v1170, %v1168
    %v1231 = vpack.c.b16 %v1171, %v1169
    %v1232 = vpack.c.b16 %v1174, %v1172
    %v1233 = vpack.c.b16 %v1175, %v1173
    %v1234 = vpack.c.b16 %v1178, %v1176
    %v1235 = vpack.c.b16 %v1179, %v1177
    %v1236 = vpack.c.b16 %v1182, %v1180
    %v1237 = vpack.c.b16 %v1183, %v1181
    %v1238 = vpack.c.b16 %v1186, %v1184
    %v1239 = vpack.c.b16 %v1187, %v1185
    %v1240 = vpack.c.b16 %v1190, %v1188
    %v1241 = vpack.c.b16 %v1191, %v1189
    %v1242 = vpack.c.b16 %v1194, %v1192
    %v1243 = vpack.c.b16 %v1195, %v1193
    %v1244 = vpack.c.b16 %v1198, %v1196
    %v1245 = vpack.c.b16 %v1199, %v1197
    %v1246 = vpack.c.b16 %v1202, %v1200
    %v1247 = vpack.c.b16 %v1203, %v1201
    %v1248 = vpack.c.b16 %v1206, %v1204
    %v1249 = vpack.c.b16 %v1207, %v1205
    %v1250 = vpack.c.b16 %v1210, %v1208
    %v1251 = vpack.c.b16 %v1211, %v1209
    %v1252 = vpack.c.b16 %v1214, %v1212
    %v1253 = vpack.c.b16 %v1215, %v1213
    %v1254 = vpack.c.b16 %v1218, %v1216
    %v1255 = vpack.c.b16 %v1219, %v1217
    %v1256 = vpack.c.b16 %v1222, %v1220
    %v1257 = vpack.c.b16 %v1223, %v1221
    %v1258 = vpack.c.b16 %v1226, %v1224
    %v1259 = vpack.c.b16 %v1227, %v1225
    %1292 = vmatprep.subr.bf16.mxu0 %v1229
    %1293 = vmatpush1.bf16.msra.mxu0 %v1228
    %1294 = vmatprep.subr.bf16.mxu0 %v1231
    %1295 = vmatpush1.bf16.msra.mxu0 %v1230
    %1296 = vmatprep.subr.bf16.mxu0 %v1233
    %1297 = vmatpush1.bf16.msra.mxu0 %v1232
    %1298 = vmatprep.subr.bf16.mxu0 %v1235
    %1299 = vmatpush1.bf16.msra.mxu0 %v1234
    %1300 = vmatprep.subr.bf16.mxu0 %v1237
    %1301 = vmatpush1.bf16.msra.mxu0 %v1236
    %1302 = vmatprep.subr.bf16.mxu0 %v1239
    %1303 = vmatpush1.bf16.msra.mxu0 %v1238
    %1304 = vmatprep.subr.bf16.mxu0 %v1241
    %1305 = vmatpush1.bf16.msra.mxu0 %v1240
    %1306 = vmatprep.subr.bf16.mxu0 %v1243
    %1307 = vmatpush1.bf16.msra.mxu0 %v1242
    %1308 = vmatprep.subr.bf16.mxu0 %v1245
    %1309 = vmatpush1.bf16.msra.mxu0 %v1244
    %1310 = vmatprep.subr.bf16.mxu0 %v1247
    %1311 = vmatpush1.bf16.msra.mxu0 %v1246
    %1312 = vmatprep.subr.bf16.mxu0 %v1249
    %1313 = vmatpush1.bf16.msra.mxu0 %v1248
    %1314 = vmatprep.subr.bf16.mxu0 %v1251
    %1315 = vmatpush1.bf16.msra.mxu0 %v1250
    %1316 = vmatprep.subr.bf16.mxu0 %v1253
    %1317 = vmatpush1.bf16.msra.mxu0 %v1252
    %1318 = vmatprep.subr.bf16.mxu0 %v1255
    %1319 = vmatpush1.bf16.msra.mxu0 %v1254
    %1320 = vmatprep.subr.bf16.mxu0 %v1257
    %1321 = vmatpush1.bf16.msra.mxu0 %v1256
    %1322 = vmatprep.subr.bf16.mxu0 %v1259
    %1323 = vmatpush1.bf16.msra.mxu0 %v1258
    %1324 = vmatprep.mubr.bf16.mxu0 %v1120
    %1325 = vmatmul.mubr.bf16.gmra.mrb[0].mxu0 %v1119
    %v1326 = vpop.f32.mrb[0].mxu0
    %v1327 = vadd.f32 %v1125, %v1326
    %v1328 = vpop.f32.mrb[0].mxu0
    %v1329 = vadd.f32 %v1129, %v1328
    %v1330 = vpop.f32.mrb[0].mxu0
    %v1331 = vadd.f32 %v1125, %v1330
    %v1332 = vpop.f32.mrb[0].mxu0
    %v1333 = vadd.f32 %v1129, %v1332
    %1334 = vdwg.mxu0
    %vm1335 = vcmp.gt.f32.partialorder %v1327, 0.0
    %vm1336 = vcmp.gt.f32.partialorder %v1329, 0.0
    %vm1337 = vcmp.gt.f32.partialorder %v1331, 0.0
    %vm1338 = vcmp.gt.f32.partialorder %v1333, 0.0
    %v1339 = vstv %s258
    %v1340 = vmul.f32 %v1339, %v1327
    %v1341 = vmul.f32 %v1339, %v1329
    %v1342 = vmul.f32 %v1339, %v1331
    %v1343 = vmul.f32 %v1339, %v1333
    %v1344 = vsel %vm1335, %v1327, %v1340
    %v1345 = vsel %vm1336, %v1329, %v1341
    %v1346 = vsel %vm1337, %v1331, %v1342
    %v1347 = vsel %vm1338, %v1333, %v1343
    %v1348 = vpack.c.bf16 %v1346, %v1344
    %v1349 = vpack.c.bf16 %v1347, %v1345
    %v1351 = vlaneseq
    %v1352 = vshrl.u32 %v1351, 7
    %v1353 = vsub.s32 0, %v1352
    %v1354 = vrot.slane %v256, %v1353
    %v1388 = vunpack.c.l.b16 %v224
    %v1389 = vunpack.c.l.b16 %v225
    %v1390 = vunpack.c.l.b16 %v226
    %v1391 = vunpack.c.l.b16 %v227
    %v1392 = vunpack.c.l.b16 %v228
    %v1393 = vunpack.c.l.b16 %v229
    %v1394 = vunpack.c.l.b16 %v230
    %v1395 = vunpack.c.l.b16 %v231
    %v1396 = vunpack.c.l.b16 %v232
    %v1397 = vunpack.c.l.b16 %v233
    %v1398 = vunpack.c.l.b16 %v234
    %v1399 = vunpack.c.l.b16 %v235
    %v1400 = vunpack.c.l.b16 %v236
    %v1401 = vunpack.c.l.b16 %v237
    %v1402 = vunpack.c.l.b16 %v238
    %v1403 = vunpack.c.l.b16 %v239
    %v1404 = vunpack.c.l.b16 %v240
    %v1405 = vunpack.c.l.b16 %v241
    %v1406 = vunpack.c.l.b16 %v242
    %v1407 = vunpack.c.l.b16 %v243
    %v1408 = vunpack.c.l.b16 %v244
    %v1409 = vunpack.c.l.b16 %v245
    %v1410 = vunpack.c.l.b16 %v246
    %v1411 = vunpack.c.l.b16 %v247
    %v1412 = vunpack.c.l.b16 %v248
    %v1413 = vunpack.c.l.b16 %v249
    %v1414 = vunpack.c.l.b16 %v250
    %v1415 = vunpack.c.l.b16 %v251
    %v1416 = vunpack.c.l.b16 %v252
    %v1417 = vunpack.c.l.b16 %v253
    %v1418 = vunpack.c.l.b16 %v254
    %v1419 = vunpack.c.l.b16 %v255
    %v1420 = vpack.c.b16 %v1389, %v1388
    %v1421 = vpack.c.b16 %v1391, %v1390
    %v1422 = vpack.c.b16 %v1393, %v1392
    %v1423 = vpack.c.b16 %v1395, %v1394
    %v1424 = vpack.c.b16 %v1397, %v1396
    %v1425 = vpack.c.b16 %v1399, %v1398
    %v1426 = vpack.c.b16 %v1401, %v1400
    %v1427 = vpack.c.b16 %v1403, %v1402
    %v1428 = vpack.c.b16 %v1405, %v1404
    %v1429 = vpack.c.b16 %v1407, %v1406
    %v1430 = vpack.c.b16 %v1409, %v1408
    %v1431 = vpack.c.b16 %v1411, %v1410
    %v1432 = vpack.c.b16 %v1413, %v1412
    %v1433 = vpack.c.b16 %v1415, %v1414
    %v1434 = vpack.c.b16 %v1417, %v1416
    %v1435 = vpack.c.b16 %v1419, %v1418
    %1452 = vmatprep.subr.bf16.mxu0 0
    %1453 = vmatpush1.bf16.msra.mxu0 %v1420
    %1454 = vmatprep.subr.bf16.mxu0 0
    %1455 = vmatpush1.bf16.msra.mxu0 %v1421
    %1456 = vmatprep.subr.bf16.mxu0 0
    %1457 = vmatpush1.bf16.msra.mxu0 %v1422
    %1458 = vmatprep.subr.bf16.mxu0 0
    %1459 = vmatpush1.bf16.msra.mxu0 %v1423
    %1460 = vmatprep.subr.bf16.mxu0 0
    %1461 = vmatpush1.bf16.msra.mxu0 %v1424
    %1462 = vmatprep.subr.bf16.mxu0 0
    %1463 = vmatpush1.bf16.msra.mxu0 %v1425
    %1464 = vmatprep.subr.bf16.mxu0 0
    %1465 = vmatpush1.bf16.msra.mxu0 %v1426
    %1466 = vmatprep.subr.bf16.mxu0 0
    %1467 = vmatpush1.bf16.msra.mxu0 %v1427
    %1468 = vmatprep.subr.bf16.mxu0 0
    %1469 = vmatpush1.bf16.msra.mxu0 %v1428
    %1470 = vmatprep.subr.bf16.mxu0 0
    %1471 = vmatpush1.bf16.msra.mxu0 %v1429
    %1472 = vmatprep.subr.bf16.mxu0 0
    %1473 = vmatpush1.bf16.msra.mxu0 %v1430
    %1474 = vmatprep.subr.bf16.mxu0 0
    %1475 = vmatpush1.bf16.msra.mxu0 %v1431
    %1476 = vmatprep.subr.bf16.mxu0 0
    %1477 = vmatpush1.bf16.msra.mxu0 %v1432
    %1478 = vmatprep.subr.bf16.mxu0 0
    %1479 = vmatpush1.bf16.msra.mxu0 %v1433
    %1480 = vmatprep.subr.bf16.mxu0 0
    %1481 = vmatpush1.bf16.msra.mxu0 %v1434
    %1482 = vmatprep.subr.bf16.mxu0 0
    %1483 = vmatpush1.bf16.msra.mxu0 %v1435
    %1484 = vmatprep.mubr.bf16.mxu0 %v1349
    %1485 = vmatmul.mubr.bf16.gmra.mrb[0].mxu0 %v1348
    %v1486 = vpop.f32.mrb[0].mxu0
    %v1487 = vadd.f32 %v1354, %v1486
    %v1488 = vpop.f32.mrb[0].mxu0
    %v1489 = vpop.f32.mrb[0].mxu0
    %v1490 = vadd.f32 %v1354, %v1489
    %v1491 = vpop.f32.mrb[0].mxu0
    %1492 = vdwg.mxu0
    %v1493 = vpack.c.bf16 %v1490, %v1487
    %v1495 = vunpack.c.l.b16 %v1493
    %v1496 = vunpack.c.h.b16 %v1493
    %v1497 = vpack.c.b16 %v1495, %v1495
    %v1498 = vpack.c.b16 %v1496, %v1496
    %1501 = vst [vmem:[%s9] sm:$0xf] %v1497
    %1502 = vst [vmem:[%s9 + $0x4] sm:$0xf] %v1498
    %v1503 = vld [vmem:[%s1] sm:$0xff]
    %v1504 = vld [vmem:[%s1 + $0x8] sm:$0xff]
    %v1505 = vld [vmem:[%s1 + $0x10] sm:$0xff]
    %v1506 = vld [vmem:[%s1 + $0x18] sm:$0xff]
    %v1507 = vld [vmem:[%s1 + $0x20] sm:$0xff]
    %v1508 = vld [vmem:[%s1 + $0x28] sm:$0xff]
    %v1509 = vld [vmem:[%s1 + $0x30] sm:$0xff]
    %v1510 = vld [vmem:[%s1 + $0x38] sm:$0xff]
    %v1511 = vld [vmem:[%s1 + $0x40] sm:$0xff]
    %v1512 = vld [vmem:[%s1 + $0x48] sm:$0xff]
    %v1513 = vld [vmem:[%s1 + $0x50] sm:$0xff]
    %v1514 = vld [vmem:[%s1 + $0x58] sm:$0xff]
    %v1515 = vld [vmem:[%s1 + $0x60] sm:$0xff]
    %v1516 = vld [vmem:[%s1 + $0x68] sm:$0xff]
    %v1517 = vld [vmem:[%s1 + $0x70] sm:$0xff]
    %v1518 = vld [vmem:[%s1 + $0x78] sm:$0xff]
    %v1519 = vpack.c.bf16 %v1511, %v1503
    %v1520 = vpack.c.bf16 %v1512, %v1504
    %v1521 = vpack.c.bf16 %v1513, %v1505
    %v1522 = vpack.c.bf16 %v1514, %v1506
    %v1523 = vpack.c.bf16 %v1515, %v1507
    %v1524 = vpack.c.bf16 %v1516, %v1508
    %v1525 = vpack.c.bf16 %v1517, %v1509
    %v1526 = vpack.c.bf16 %v1518, %v1510
    %1527 = vmatprep.subr.bf16.mxu0 %v679
    %1528 = vmatpush1.bf16.msra.mxu0 %v678
    %1529 = vmatprep.subr.bf16.mxu0 %v681
    %1530 = vmatpush1.bf16.msra.mxu0 %v680
    %1531 = vmatprep.subr.bf16.mxu0 %v683
    %1532 = vmatpush1.bf16.msra.mxu0 %v682
    %1533 = vmatprep.subr.bf16.mxu0 %v685
    %1534 = vmatpush1.bf16.msra.mxu0 %v684
    %1535 = vmatprep.subr.bf16.mxu0 %v687
    %1536 = vmatpush1.bf16.msra.mxu0 %v686
    %1537 = vmatprep.subr.bf16.mxu0 %v689
    %1538 = vmatpush1.bf16.msra.mxu0 %v688
    %1539 = vmatprep.subr.bf16.mxu0 %v691
    %1540 = vmatpush1.bf16.msra.mxu0 %v690
    %1541 = vmatprep.subr.bf16.mxu0 %v693
    %1542 = vmatpush1.bf16.msra.mxu0 %v692
    %1543 = vmatprep.subr.bf16.mxu0 %v695
    %1544 = vmatpush1.bf16.msra.mxu0 %v694
    %1545 = vmatprep.subr.bf16.mxu0 %v697
    %1546 = vmatpush1.bf16.msra.mxu0 %v696
    %1547 = vmatprep.subr.bf16.mxu0 %v699
    %1548 = vmatpush1.bf16.msra.mxu0 %v698
    %1549 = vmatprep.subr.bf16.mxu0 %v701
    %1550 = vmatpush1.bf16.msra.mxu0 %v700
    %1551 = vmatprep.subr.bf16.mxu0 %v703
    %1552 = vmatpush1.bf16.msra.mxu0 %v702
    %1553 = vmatprep.subr.bf16.mxu0 %v705
    %1554 = vmatpush1.bf16.msra.mxu0 %v704
    %1555 = vmatprep.subr.bf16.mxu0 %v707
    %1556 = vmatpush1.bf16.msra.mxu0 %v706
    %1557 = vmatprep.subr.bf16.mxu0 %v709
    %1558 = vmatpush1.bf16.msra.mxu0 %v708
    %1559 = vmatprep.mubr.bf16.mxu0 %v1520
    %1560 = vmatmul.mubr.bf16.gmra.mrb[0].mxu0 %v1519
    %v1561 = vpop.f32.mrb[0].mxu0
    %v1562 = vadd.f32 %v287, %v1561
    %v1563 = vpop.f32.mrb[0].mxu0
    %v1564 = vadd.f32 %v291, %v1563
    %v1565 = vpop.f32.mrb[0].mxu0
    %v1566 = vadd.f32 %v287, %v1565
    %v1567 = vpop.f32.mrb[0].mxu0
    %v1568 = vadd.f32 %v291, %v1567
    %1569 = vdwg.mxu0
    %1570 = vmatprep.subr.bf16.mxu0 %v711
    %1571 = vmatpush1.bf16.msra.mxu0 %v710
    %1572 = vmatprep.subr.bf16.mxu0 %v713
    %1573 = vmatpush1.bf16.msra.mxu0 %v712
    %1574 = vmatprep.subr.bf16.mxu0 %v715
    %1575 = vmatpush1.bf16.msra.mxu0 %v714
    %1576 = vmatprep.subr.bf16.mxu0 %v717
    %1577 = vmatpush1.bf16.msra.mxu0 %v716
    %1578 = vmatprep.subr.bf16.mxu0 %v719
    %1579 = vmatpush1.bf16.msra.mxu0 %v718
    %1580 = vmatprep.subr.bf16.mxu0 %v721
    %1581 = vmatpush1.bf16.msra.mxu0 %v720
    %1582 = vmatprep.subr.bf16.mxu0 %v723
    %1583 = vmatpush1.bf16.msra.mxu0 %v722
    %1584 = vmatprep.subr.bf16.mxu0 %v725
    %1585 = vmatpush1.bf16.msra.mxu0 %v724
    %1586 = vmatprep.subr.bf16.mxu0 %v727
    %1587 = vmatpush1.bf16.msra.mxu0 %v726
    %1588 = vmatprep.subr.bf16.mxu0 %v729
    %1589 = vmatpush1.bf16.msra.mxu0 %v728
    %1590 = vmatprep.subr.bf16.mxu0 %v731
    %1591 = vmatpush1.bf16.msra.mxu0 %v730
    %1592 = vmatprep.subr.bf16.mxu0 %v733
    %1593 = vmatpush1.bf16.msra.mxu0 %v732
    %1594 = vmatprep.subr.bf16.mxu0 %v735
    %1595 = vmatpush1.bf16.msra.mxu0 %v734
    %1596 = vmatprep.subr.bf16.mxu0 %v737
    %1597 = vmatpush1.bf16.msra.mxu0 %v736
    %1598 = vmatprep.subr.bf16.mxu0 %v739
    %1599 = vmatpush1.bf16.msra.mxu0 %v738
    %1600 = vmatprep.subr.bf16.mxu0 %v741
    %1601 = vmatpush1.bf16.msra.mxu0 %v740
    %1602 = vmatprep.mubr.bf16.mxu0 %v1522
    %1603 = vmatmul.mubr.bf16.gmra.mrb[0].mxu0 %v1521
    %v1604 = vpop.f32.mrb[0].mxu0
    %v1605 = vadd.f32 %v1562, %v1604
    %v1606 = vpop.f32.mrb[0].mxu0
    %v1607 = vadd.f32 %v1564, %v1606
    %v1608 = vpop.f32.mrb[0].mxu0
    %v1609 = vadd.f32 %v1566, %v1608
    %v1610 = vpop.f32.mrb[0].mxu0
    %v1611 = vadd.f32 %v1568, %v1610
    %1612 = vdwg.mxu0
    %1613 = vmatprep.subr.bf16.mxu0 %v743
    %1614 = vmatpush1.bf16.msra.mxu0 %v742
    %1615 = vmatprep.subr.bf16.mxu0 %v745
    %1616 = vmatpush1.bf16.msra.mxu0 %v744
    %1617 = vmatprep.subr.bf16.mxu0 %v747
    %1618 = vmatpush1.bf16.msra.mxu0 %v746
    %1619 = vmatprep.subr.bf16.mxu0 %v749
    %1620 = vmatpush1.bf16.msra.mxu0 %v748
    %1621 = vmatprep.subr.bf16.mxu0 %v751
    %1622 = vmatpush1.bf16.msra.mxu0 %v750
    %1623 = vmatprep.subr.bf16.mxu0 %v753
    %1624 = vmatpush1.bf16.msra.mxu0 %v752
    %1625 = vmatprep.subr.bf16.mxu0 %v755
    %1626 = vmatpush1.bf16.msra.mxu0 %v754
    %1627 = vmatprep.subr.bf16.mxu0 %v757
    %1628 = vmatpush1.bf16.msra.mxu0 %v756
    %1629 = vmatprep.subr.bf16.mxu0 %v759
    %1630 = vmatpush1.bf16.msra.mxu0 %v758
    %1631 = vmatprep.subr.bf16.mxu0 %v761
    %1632 = vmatpush1.bf16.msra.mxu0 %v760
    %1633 = vmatprep.subr.bf16.mxu0 %v763
    %1634 = vmatpush1.bf16.msra.mxu0 %v762
    %1635 = vmatprep.subr.bf16.mxu0 %v765
    %1636 = vmatpush1.bf16.msra.mxu0 %v764
    %1637 = vmatprep.subr.bf16.mxu0 %v767
    %1638 = vmatpush1.bf16.msra.mxu0 %v766
    %1639 = vmatprep.subr.bf16.mxu0 %v769
    %1640 = vmatpush1.bf16.msra.mxu0 %v768
    %1641 = vmatprep.subr.bf16.mxu0 %v771
    %1642 = vmatpush1.bf16.msra.mxu0 %v770
    %1643 = vmatprep.subr.bf16.mxu0 %v773
    %1644 = vmatpush1.bf16.msra.mxu0 %v772
    %1645 = vmatprep.mubr.bf16.mxu0 %v1524
    %1646 = vmatmul.mubr.bf16.gmra.mrb[0].mxu0 %v1523
    %v1647 = vpop.f32.mrb[0].mxu0
    %v1648 = vadd.f32 %v1605, %v1647
    %v1649 = vpop.f32.mrb[0].mxu0
    %v1650 = vadd.f32 %v1607, %v1649
    %v1651 = vpop.f32.mrb[0].mxu0
    %v1652 = vadd.f32 %v1609, %v1651
    %v1653 = vpop.f32.mrb[0].mxu0
    %v1654 = vadd.f32 %v1611, %v1653
    %1655 = vdwg.mxu0
    %1656 = vmatprep.subr.bf16.mxu0 %v775
    %1657 = vmatpush1.bf16.msra.mxu0 %v774
    %1658 = vmatprep.subr.bf16.mxu0 %v777
    %1659 = vmatpush1.bf16.msra.mxu0 %v776
    %1660 = vmatprep.subr.bf16.mxu0 %v779
    %1661 = vmatpush1.bf16.msra.mxu0 %v778
    %1662 = vmatprep.subr.bf16.mxu0 %v781
    %1663 = vmatpush1.bf16.msra.mxu0 %v780
    %1664 = vmatprep.subr.bf16.mxu0 %v783
    %1665 = vmatpush1.bf16.msra.mxu0 %v782
    %1666 = vmatprep.subr.bf16.mxu0 %v785
    %1667 = vmatpush1.bf16.msra.mxu0 %v784
    %1668 = vmatprep.subr.bf16.mxu0 %v787
    %1669 = vmatpush1.bf16.msra.mxu0 %v786
    %1670 = vmatprep.subr.bf16.mxu0 %v789
    %1671 = vmatpush1.bf16.msra.mxu0 %v788
    %1672 = vmatprep.subr.bf16.mxu0 %v791
    %1673 = vmatpush1.bf16.msra.mxu0 %v790
    %1674 = vmatprep.subr.bf16.mxu0 %v793
    %1675 = vmatpush1.bf16.msra.mxu0 %v792
    %1676 = vmatprep.subr.bf16.mxu0 %v795
    %1677 = vmatpush1.bf16.msra.mxu0 %v794
    %1678 = vmatprep.subr.bf16.mxu0 %v797
    %1679 = vmatpush1.bf16.msra.mxu0 %v796
    %1680 = vmatprep.subr.bf16.mxu0 %v799
    %1681 = vmatpush1.bf16.msra.mxu0 %v798
    %1682 = vmatprep.subr.bf16.mxu0 %v801
    %1683 = vmatpush1.bf16.msra.mxu0 %v800
    %1684 = vmatprep.subr.bf16.mxu0 %v803
    %1685 = vmatpush1.bf16.msra.mxu0 %v802
    %1686 = vmatprep.subr.bf16.mxu0 %v805
    %1687 = vmatpush1.bf16.msra.mxu0 %v804
    %1688 = vmatprep.mubr.bf16.mxu0 %v1526
    %1689 = vmatmul.mubr.bf16.gmra.mrb[0].mxu0 %v1525
    %v1690 = vpop.f32.mrb[0].mxu0
    %v1691 = vadd.f32 %v1648, %v1690
    %v1692 = vpop.f32.mrb[0].mxu0
    %v1693 = vadd.f32 %v1650, %v1692
    %v1694 = vpop.f32.mrb[0].mxu0
    %v1695 = vadd.f32 %v1652, %v1694
    %v1696 = vpop.f32.mrb[0].mxu0
    %v1697 = vadd.f32 %v1654, %v1696
    %1698 = vdwg.mxu0
    %vm1699 = vcmp.gt.f32.partialorder %v1691, 0.0
    %vm1700 = vcmp.gt.f32.partialorder %v1693, 0.0
    %vm1701 = vcmp.gt.f32.partialorder %v1695, 0.0
    %vm1702 = vcmp.gt.f32.partialorder %v1697, 0.0
    %v1703 = vmul.f32 %v1110, %v1691
    %v1704 = vmul.f32 %v1110, %v1693
    %v1705 = vmul.f32 %v1110, %v1695
    %v1706 = vmul.f32 %v1110, %v1697
    %v1707 = vsel %vm1699, %v1691, %v1703
    %v1708 = vsel %vm1700, %v1693, %v1704
    %v1709 = vsel %vm1701, %v1695, %v1705
    %v1710 = vsel %vm1702, %v1697, %v1706
    %v1711 = vpack.c.bf16 %v1709, %v1707
    %v1712 = vpack.c.bf16 %v1710, %v1708
    %1713 = vmatprep.subr.bf16.mxu0 %v1229
    %1714 = vmatpush1.bf16.msra.mxu0 %v1228
    %1715 = vmatprep.subr.bf16.mxu0 %v1231
    %1716 = vmatpush1.bf16.msra.mxu0 %v1230
    %1717 = vmatprep.subr.bf16.mxu0 %v1233
    %1718 = vmatpush1.bf16.msra.mxu0 %v1232
    %1719 = vmatprep.subr.bf16.mxu0 %v1235
    %1720 = vmatpush1.bf16.msra.mxu0 %v1234
    %1721 = vmatprep.subr.bf16.mxu0 %v1237
    %1722 = vmatpush1.bf16.msra.mxu0 %v1236
    %1723 = vmatprep.subr.bf16.mxu0 %v1239
    %1724 = vmatpush1.bf16.msra.mxu0 %v1238
    %1725 = vmatprep.subr.bf16.mxu0 %v1241
    %1726 = vmatpush1.bf16.msra.mxu0 %v1240
    %1727 = vmatprep.subr.bf16.mxu0 %v1243
    %1728 = vmatpush1.bf16.msra.mxu0 %v1242
    %1729 = vmatprep.subr.bf16.mxu0 %v1245
    %1730 = vmatpush1.bf16.msra.mxu0 %v1244
    %1731 = vmatprep.subr.bf16.mxu0 %v1247
    %1732 = vmatpush1.bf16.msra.mxu0 %v1246
    %1733 = vmatprep.subr.bf16.mxu0 %v1249
    %1734 = vmatpush1.bf16.msra.mxu0 %v1248
    %1735 = vmatprep.subr.bf16.mxu0 %v1251
    %1736 = vmatpush1.bf16.msra.mxu0 %v1250
    %1737 = vmatprep.subr.bf16.mxu0 %v1253
    %1738 = vmatpush1.bf16.msra.mxu0 %v1252
    %1739 = vmatprep.subr.bf16.mxu0 %v1255
    %1740 = vmatpush1.bf16.msra.mxu0 %v1254
    %1741 = vmatprep.subr.bf16.mxu0 %v1257
    %1742 = vmatpush1.bf16.msra.mxu0 %v1256
    %1743 = vmatprep.subr.bf16.mxu0 %v1259
    %1744 = vmatpush1.bf16.msra.mxu0 %v1258
    %1745 = vmatprep.mubr.bf16.mxu0 %v1712
    %1746 = vmatmul.mubr.bf16.gmra.mrb[0].mxu0 %v1711
    %v1747 = vpop.f32.mrb[0].mxu0
    %v1748 = vadd.f32 %v1125, %v1747
    %v1749 = vpop.f32.mrb[0].mxu0
    %v1750 = vadd.f32 %v1129, %v1749
    %v1751 = vpop.f32.mrb[0].mxu0
    %v1752 = vadd.f32 %v1125, %v1751
    %v1753 = vpop.f32.mrb[0].mxu0
    %v1754 = vadd.f32 %v1129, %v1753
    %1755 = vdwg.mxu0
    %vm1756 = vcmp.gt.f32.partialorder %v1748, 0.0
    %vm1757 = vcmp.gt.f32.partialorder %v1750, 0.0
    %vm1758 = vcmp.gt.f32.partialorder %v1752, 0.0
    %vm1759 = vcmp.gt.f32.partialorder %v1754, 0.0
    %v1760 = vmul.f32 %v1339, %v1748
    %v1761 = vmul.f32 %v1339, %v1750
    %v1762 = vmul.f32 %v1339, %v1752
    %v1763 = vmul.f32 %v1339, %v1754
    %v1764 = vsel %vm1756, %v1748, %v1760
    %v1765 = vsel %vm1757, %v1750, %v1761
    %v1766 = vsel %vm1758, %v1752, %v1762
    %v1767 = vsel %vm1759, %v1754, %v1763
    %v1768 = vpack.c.bf16 %v1766, %v1764
    %v1769 = vpack.c.bf16 %v1767, %v1765
    %1770 = vmatprep.subr.bf16.mxu0 0
    %1771 = vmatpush1.bf16.msra.mxu0 %v1420
    %1772 = vmatprep.subr.bf16.mxu0 0
    %1773 = vmatpush1.bf16.msra.mxu0 %v1421
    %1774 = vmatprep.subr.bf16.mxu0 0
    %1775 = vmatpush1.bf16.msra.mxu0 %v1422
    %1776 = vmatprep.subr.bf16.mxu0 0
    %1777 = vmatpush1.bf16.msra.mxu0 %v1423
    %1778 = vmatprep.subr.bf16.mxu0 0
    %1779 = vmatpush1.bf16.msra.mxu0 %v1424
    %1780 = vmatprep.subr.bf16.mxu0 0
    %1781 = vmatpush1.bf16.msra.mxu0 %v1425
    %1782 = vmatprep.subr.bf16.mxu0 0
    %1783 = vmatpush1.bf16.msra.mxu0 %v1426
    %1784 = vmatprep.subr.bf16.mxu0 0
    %1785 = vmatpush1.bf16.msra.mxu0 %v1427
    %1786 = vmatprep.subr.bf16.mxu0 0
    %1787 = vmatpush1.bf16.msra.mxu0 %v1428
    %1788 = vmatprep.subr.bf16.mxu0 0
    %1789 = vmatpush1.bf16.msra.mxu0 %v1429
    %1790 = vmatprep.subr.bf16.mxu0 0
    %1791 = vmatpush1.bf16.msra.mxu0 %v1430
    %1792 = vmatprep.subr.bf16.mxu0 0
    %1793 = vmatpush1.bf16.msra.mxu0 %v1431
    %1794 = vmatprep.subr.bf16.mxu0 0
    %1795 = vmatpush1.bf16.msra.mxu0 %v1432
    %1796 = vmatprep.subr.bf16.mxu0 0
    %1797 = vmatpush1.bf16.msra.mxu0 %v1433
    %1798 = vmatprep.subr.bf16.mxu0 0
    %1799 = vmatpush1.bf16.msra.mxu0 %v1434
    %1800 = vmatprep.subr.bf16.mxu0 0
    %1801 = vmatpush1.bf16.msra.mxu0 %v1435
    %1802 = vmatprep.mubr.bf16.mxu0 %v1769
    %1803 = vmatmul.mubr.bf16.gmra.mrb[0].mxu0 %v1768
    %v1804 = vpop.f32.mrb[0].mxu0
    %v1805 = vadd.f32 %v1354, %v1804
    %v1806 = vpop.f32.mrb[0].mxu0
    %v1807 = vpop.f32.mrb[0].mxu0
    %v1808 = vadd.f32 %v1354, %v1807
    %v1809 = vpop.f32.mrb[0].mxu0
    %1810 = vdwg.mxu0
    %v1811 = vpack.c.bf16 %v1808, %v1805
    %v1813 = vunpack.c.l.b16 %v1811
    %v1814 = vunpack.c.h.b16 %v1811
    %v1815 = vpack.c.b16 %v1813, %v1813
    %v1816 = vpack.c.b16 %v1814, %v1814
    %1819 = vst [vmem:[%s10] sm:$0xf] %v1815
    %1820 = vst [vmem:[%s10 + $0x4] sm:$0xf] %v1816
    // Predicated region
    $region46: #{siamese_forward.1} parent=1 // pred_check
      _
    $region47: #{siamese_forward.1} parent=1 // pred_check_branch
      %1822 = sbr.rel (0) target = $region49
    $region48: #{siamese_forward.1} parent=1 // pred_region
      _
    $region49: #{siamese_forward.1} parent=1 // pred_fallthru
      _
    // Predicated region
    $region50: #{siamese_forward.1} parent=1 // pred_check
      _
    $region51: #{siamese_forward.1} parent=1 // pred_check_branch
      %1824 = sbr.rel (0) target = $region53
    $region52: #{siamese_forward.1} parent=1 // pred_region
      _
    $region53: #{siamese_forward.1} parent=1 // pred_fallthru
      _
    // Predicated region
    $region54: #{siamese_forward.1} parent=1 // pred_check
      _
    $region55: #{siamese_forward.1} parent=1 // pred_check_branch
      %1826 = sbr.rel (0) target = $region57
    $region56: #{siamese_forward.1} parent=1 // pred_region
      _
    $region57: #{siamese_forward.1} parent=1 // pred_fallthru
      _
    // Predicated region
    $region58: #{siamese_forward.1} parent=1 // pred_check
      _
    $region59: #{siamese_forward.1} parent=1 // pred_check_branch
      %1828 = sbr.rel (0) target = $region61
    $region60: #{siamese_forward.1} parent=1 // pred_region
      _
    $region61: #{siamese_forward.1} parent=1 // pred_fallthru
      _
    %1829 = vsyncpa [#allocation3], 1
    %1830 = vsyncpa [#allocation4], 1

</llo_original>
